<compile_context>
chip_gen: v6e
topology: v6e:2x2x1
jax: 0.10.0
libtpu: 0.0.40
codegen_flags: <defaults>
</compile_context>

<pallas_src>
import functools

import jax
import jax.numpy as jnp
from jax.experimental import pallas as pl
from jax.experimental.pallas import tpu as pltpu

F32 = jnp.float32
BF16 = jnp.bfloat16


def _hw_config():
    """(row-tile target, scoped VMEM limit) tuned per TPU generation."""
    target, limit = 256, 48 * 1024 * 1024            # safe default for v7x (64 MiB VMEM)
    try:
        cap = int(pltpu.get_tpu_info().vmem_capacity_bytes)
        if cap >= 100 * 1024 * 1024:                  # v5e / v6e: 128 MiB VMEM -> bigger tiles
            target, limit = 512, 96 * 1024 * 1024
        else:
            limit = min(limit, (cap * 3) // 4)
    except Exception:  # pragma: no cover - info query not available everywhere
        pass
    return target, limit


_TILE_TARGET, _VMEM_LIMIT = _hw_config()


def _cparams(semantics):
    return pltpu.CompilerParams(dimension_semantics=semantics,
                                vmem_limit_bytes=_VMEM_LIMIT)


def _round_up(x, m):
    return ((x + m - 1) // m) * m


def _tile_rows(m):
    """Row tile (multiple of 8, <= target) + padded row count; never one huge whole-M block."""
    tm = min(_TILE_TARGET, _round_up(m, 8))
    return tm, _round_up(m, tm)


def _pad_rows(x, mp):
    m = x.shape[0]
    if m == mp:
        return x
    return jnp.pad(x, ((0, mp - m),) + ((0, 0),) * (x.ndim - 1))


# ---------------------------------------------------------------------------
# In-kernel math helpers
# ---------------------------------------------------------------------------
def _gelu(x):
    # tanh-form GELU: the tanh runs on the EUP slot.  ~1e-3 max deviation from the exact erf
    # GELU used by PyTorch nn.GELU() -- acceptable for inference.
    c = 0.7978845608028654  # sqrt(2/pi)
    return 0.5 * x * (1.0 + jnp.tanh(c * (x + 0.044715 * x * x * x)))


# ---------------------------------------------------------------------------
# Fused matmul kernel:  [LN prologue] -> bf16 matmul (f32 acc) + bias -> [LN epilogue]
#                       -> [fused residual add] -> [activation]          (bf16 output)
# ---------------------------------------------------------------------------
def _mm_kernel(*refs, act, ln_in_eps, ln_out_eps, has_res):
    it = iter(refs)
    x_ref = next(it)
    w_ref = next(it)
    b_ref = next(it)
    gi = bi = go = bo = r_ref = None
    if ln_in_eps is not None:
        gi = next(it)
        bi = next(it)
    if ln_out_eps is not None:
        go = next(it)
        bo = next(it)
    if has_res:
        r_ref = next(it)
    o_ref = next(it)

    x = x_ref[...]
    if ln_in_eps is not None:                        # LayerNorm prologue (f32 stats)
        x = x.astype(F32)
        mu = jnp.mean(x, axis=-1, keepdims=True)
        xc = x - mu
        var = jnp.mean(xc * xc, axis=-1, keepdims=True)
        x = xc * jax.lax.rsqrt(var + ln_in_eps) * gi[...] + bi[...]
    y = jnp.dot(x.astype(BF16), w_ref[...], preferred_element_type=jnp.float32)
    y = y + b_ref[...]
    if ln_out_eps is not None:                       # LayerNorm epilogue (patch embed)
        mu = jnp.mean(y, axis=-1, keepdims=True)
        yc = y - mu
        var = jnp.mean(yc * yc, axis=-1, keepdims=True)
        y = yc * jax.lax.rsqrt(var + ln_out_eps) * go[...] + bo[...]
    if has_res:                                      # residual add BEFORE activation
        y = y + r_ref[...].astype(F32)
    if act == "relu":
        y = jnp.maximum(y, 0.0)
    elif act == "gelu":
        y = _gelu(y)
    o_ref[...] = y.astype(o_ref.dtype)


@functools.partial(jax.jit, static_argnames=("act", "ln_in_eps", "ln_out_eps", "has_res"))
def _fused_matmul_core(x, w, b, lig, lib, log, lob, res, *,
                       act, ln_in_eps, ln_out_eps, has_res):
    M, K = x.shape
    N = w.shape[1]
    tm, Mp = _tile_rows(M)
    xp = _pad_rows(x, Mp)
    arrays = [xp, w, b.reshape(1, N).astype(F32)]
    specs = [pl.BlockSpec((tm, K), lambda i: (i, 0)),
             pl.BlockSpec((K, N), lambda i: (0, 0)),
             pl.BlockSpec((1, N), lambda i: (0, 0))]
    if ln_in_eps is not None:
        arrays += [lig.reshape(1, K), lib.reshape(1, K)]
        specs += [pl.BlockSpec((1, K), lambda i: (0, 0)),
                  pl.BlockSpec((1, K), lambda i: (0, 0))]
    if ln_out_eps is not None:
        arrays += [log.reshape(1, N), lob.reshape(1, N)]
        specs += [pl.BlockSpec((1, N), lambda i: (0, 0)),
                  pl.BlockSpec((1, N), lambda i: (0, 0))]
    if has_res:
        arrays.append(_pad_rows(res, Mp))
        specs.append(pl.BlockSpec((tm, N), lambda i: (i, 0)))

    kernel = functools.partial(_mm_kernel, act=act, ln_in_eps=ln_in_eps,
                               ln_out_eps=ln_out_eps, has_res=has_res)
    flops = int(2 * Mp * K * N)
    bytes_acc = int(2 * Mp * K + 2 * K * N + 2 * Mp * N + (2 * Mp * N if has_res else 0))
    trans = int(Mp * N) if act == "gelu" else 0
    out = pl.pallas_call(
        kernel,
        out_shape=jax.ShapeDtypeStruct((Mp, N), BF16),
        grid=(Mp // tm,),
        in_specs=specs,
        out_specs=pl.BlockSpec((tm, N), lambda i: (i, 0)),
        compiler_params=_cparams(("parallel",)),
        cost_estimate=pl.CostEstimate(flops=flops, transcendentals=trans,
                                      bytes_accessed=bytes_acc),
    )(*arrays)
    return out[:M] if Mp != M else out


def fused_matmul(x, w, b, *, ln_in=None, ln_out=None, residual=None, act="none"):
    """y = [act]([LN_out](([LN_in](x)) @ w + b) [+ residual]);  bf16 in/out, f32 accumulation."""
    lig, lib, lie = (None, None, None) if ln_in is None else ln_in
    log, lob, loe = (None, None, None) if ln_out is None else ln_out
    return _fused_matmul_core(x, w, b, lig, lib, log, lob, residual,
                              act=act, ln_in_eps=lie, ln_out_eps=loe,
                              has_res=residual is not None)


# ---------------------------------------------------------------------------
# Fused q/k/v (or k/v) projection: one LN prologue, one matmul over concatenated weights,
# separate lane-dense outputs (no post-hoc slicing in HBM).
# ---------------------------------------------------------------------------
def _qkv_split_kernel(x_ref, w_ref, b_ref, g_ref, be_ref, *o_refs, ln_eps):
    x = x_ref[...].astype(F32)
    mu = jnp.mean(x, axis=-1, keepdims=True)
    xc = x - mu
    var = jnp.mean(xc * xc, axis=-1, keepdims=True)
    xn = (xc * jax.lax.rsqrt(var + ln_eps) * g_ref[...] + be_ref[...]).astype(BF16)
    y = jnp.dot(xn, w_ref[...], preferred_element_type=jnp.float32) + b_ref[...]
    n = len(o_refs)
    no = y.shape[-1] // n
    for s in range(n):
        o_refs[s][...] = y[:, s * no:(s + 1) * no].astype(o_refs[s].dtype)


@functools.partial(jax.jit, static_argnames=("n_out", "ln_eps"))
def _qkv_matmul_core(x, w, b, g, be, *, n_out, ln_eps):
    M, K = x.shape
    Ntot = w.shape[1]
    No = Ntot // n_out
    tm, Mp = _tile_rows(M)
    xp = _pad_rows(x, Mp)
    out_shape = tuple(jax.ShapeDtypeStruct((Mp, No), BF16) for _ in range(n_out))
    out_specs = [pl.BlockSpec((tm, No), lambda i: (i, 0)) for _ in range(n_out)]
    outs = pl.pallas_call(
        functools.partial(_qkv_split_kernel, ln_eps=ln_eps),
        out_shape=out_shape,
        grid=(Mp // tm,),
        in_specs=[pl.BlockSpec((tm, K), lambda i: (i, 0)),
                  pl.BlockSpec((K, Ntot), lambda i: (0, 0)),
                  pl.BlockSpec((1, Ntot), lambda i: (0, 0)),
                  pl.BlockSpec((1, K), lambda i: (0, 0)),
                  pl.BlockSpec((1, K), lambda i: (0, 0))],
        out_specs=out_specs,
        compiler_params=_cparams(("parallel",)),
        cost_estimate=pl.CostEstimate(flops=int(2 * Mp * K * Ntot), transcendentals=0,
                                      bytes_accessed=int(2 * Mp * (K + Ntot) + 2 * K * Ntot)),
    )(xp, w, b.reshape(1, Ntot).astype(F32), g.reshape(1, K), be.reshape(1, K))
    if Mp != M:
        outs = tuple(o[:M] for o in outs)
    return outs


def qkv_matmul(x, w, b, ln, n_out):
    g, be, eps = ln
    return _qkv_matmul_core(x, w, b, g, be, n_out=n_out, ln_eps=eps)


# ---------------------------------------------------------------------------
# Stand-alone LayerNorm (only where the normalized tensor is reused by two consumers)
# ---------------------------------------------------------------------------
def _ln_kernel(x_ref, g_ref, b_ref, o_ref, *, eps):
    x = x_ref[...].astype(F32)
    mu = jnp.mean(x, axis=-1, keepdims=True)
    xc = x - mu
    var = jnp.mean(xc * xc, axis=-1, keepdims=True)
    o_ref[...] = (xc * jax.lax.rsqrt(var + eps) * g_ref[...] + b_ref[...]).astype(o_ref.dtype)


@functools.partial(jax.jit, static_argnames=("eps",))
def layer_norm(x, g, b, eps):
    M, C = x.shape
    tm, Mp = _tile_rows(M)
    out = pl.pallas_call(
        functools.partial(_ln_kernel, eps=eps),
        out_shape=jax.ShapeDtypeStruct((Mp, C), BF16),
        grid=(Mp // tm,),
        in_specs=[pl.BlockSpec((tm, C), lambda i: (i, 0)),
                  pl.BlockSpec((1, C), lambda i: (0, 0)),
                  pl.BlockSpec((1, C), lambda i: (0, 0))],
        out_specs=pl.BlockSpec((tm, C), lambda i: (i, 0)),
        compiler_params=_cparams(("parallel",)),
    )(_pad_rows(x, Mp), g.reshape(1, C), b.reshape(1, C))
    return out[:M] if Mp != M else out


# ---------------------------------------------------------------------------
# Multi-head attention in (B, N, C) layout: heads split in-VMEM, lane-dense (tn, C) output,
# no XLA head transposes.
# ---------------------------------------------------------------------------
def _attn_kernel(q_ref, k_ref, v_ref, o_ref, *, scale, num_heads):
    q = q_ref[0]                                    # (tn, C) bf16
    k = k_ref[0]                                    # (Nk, C) bf16
    v = v_ref[0]
    hd = q.shape[-1] // num_heads
    outs = []
    for h in range(num_heads):
        lo, hi = h * hd, (h + 1) * hd
        qh = q[:, lo:hi].astype(BF16)
        kh = k[:, lo:hi].astype(BF16)
        vh = v[:, lo:hi].astype(BF16)
        s = jax.lax.dot_general(qh, kh, (((1,), (1,)), ((), ())),
                                preferred_element_type=jnp.float32) * scale
        s = s - jnp.max(s, axis=-1, keepdims=True)
        e = jnp.exp(s)
        p = e * pl.reciprocal(jnp.sum(e, axis=-1, keepdims=True), approx=True)
        outs.append(jnp.dot(p.astype(BF16), vh, preferred_element_type=jnp.float32))
    o = outs[0] if num_heads == 1 else jnp.concatenate(outs, axis=-1)
    o_ref[0] = o.astype(o_ref.dtype)


@functools.partial(jax.jit, static_argnames=("num_heads", "scale"))
def attention_core(q, k, v, num_heads, scale):
    """q:(B,N,C)  k,v:(B,Nk,C)  ->  per-head softmax(q k^T * scale) v, heads concatenated."""
    B, N, C = q.shape
    Nk = k.shape[1]
    tn, Np = _tile_rows(N)
    qp = jnp.pad(q, ((0, 0), (0, Np - N), (0, 0))) if Np != N else q
    out = pl.pallas_call(
        functools.partial(_attn_kernel, scale=scale, num_heads=num_heads),
        out_shape=jax.ShapeDtypeStruct((B, Np, C), BF16),
        grid=(B, Np // tn),
        in_specs=[pl.BlockSpec((1, tn, C), lambda i, j: (i, j, 0)),
                  pl.BlockSpec((1, Nk, C), lambda i, j: (i, 0, 0)),
                  pl.BlockSpec((1, Nk, C), lambda i, j: (i, 0, 0))],
        out_specs=pl.BlockSpec((1, tn, C), lambda i, j: (i, j, 0)),
        compiler_params=_cparams(("parallel", "parallel")),
        cost_estimate=pl.CostEstimate(flops=int(4 * B * Np * Nk * C),
                                      transcendentals=int(B * Np * Nk * num_heads),
                                      bytes_accessed=int(2 * B * (2 * Np * C + 2 * Nk * C))),
    )(qp, k, v)
    return out[:, :N] if Np != N else out


# ---------------------------------------------------------------------------
# Depthwise 3x3 conv + GELU, row-tiled with a 2-row halo (valid on v7x's 64 MiB VMEM at
# production resolutions).
# ---------------------------------------------------------------------------
def _dwconv_gelu_kernel(x_ref, w_ref, b_ref, o_ref):
    th, W = o_ref.shape[1], o_ref.shape[2]
    x = x_ref[...][:, 0]                            # (1, th+2, W+2, tc)
    w = w_ref[...]                                  # (9, tc) f32
    acc = jnp.zeros(o_ref.shape, jnp.float32)       # (1, th, W, tc)
    for t in range(9):
        di, dj = t // 3, t % 3
        acc = acc + x[:, di:di + th, dj:dj + W, :].astype(F32) * w[t]
    o_ref[...] = _gelu(acc + b_ref[0]).astype(o_ref.dtype)


@jax.jit
def dwconv3x3_gelu(x_nhwc, w9c, b):
    """Depthwise 3x3 conv (pad=1) + GELU, gridded over (batch, row tiles, channel tiles)."""
    B, H, W, C = x_nhwc.shape
    th = min(H, 16)
    while H % th:
        th -= 1
    nrt = H // th
    xp = jnp.pad(x_nhwc, ((0, 0), (1, 1), (1, 1), (0, 0)))
    Wp = W + 2
    # TODO(synk): halo handled by stacking overlapping row slabs in XLA ((th+2)/th duplication);
    # a manual make_async_copy halo DMA would avoid even that small extra HBM pass.
    slabs = jnp.stack([xp[:, r * th:r * th + th + 2] for r in range(nrt)], axis=1)
    tc = 256 if C % 256 == 0 else (128 if C % 128 == 0 else C)
    return pl.pallas_call(
        _dwconv_gelu_kernel,
        out_shape=jax.ShapeDtypeStruct((B, H, W, C), BF16),
        grid=(B, nrt, C // tc),
        in_specs=[pl.BlockSpec((1, 1, th + 2, Wp, tc), lambda bi, ri, ci: (bi, ri, 0, 0, ci)),
                  pl.BlockSpec((9, tc), lambda bi, ri, ci: (0, ci)),
                  pl.BlockSpec((1, tc), lambda bi, ri, ci: (0, ci))],
        out_specs=pl.BlockSpec((1, th, W, tc), lambda bi, ri, ci: (bi, ri, 0, ci)),
        compiler_params=_cparams(("parallel", "parallel", "parallel")),
        cost_estimate=pl.CostEstimate(flops=int(18 * B * H * W * C),
                                      transcendentals=int(B * H * W * C),
                                      bytes_accessed=int(4 * B * H * W * C)),
    )(slabs, w9c, b.reshape(1, C))


# ---------------------------------------------------------------------------
# Model glue (reshapes, padding, im2col, parameter handling)
# ---------------------------------------------------------------------------
MIT_B5 = dict(
    embed_dims=(64, 128, 320, 512),
    num_heads=(1, 2, 5, 8),
    mlp_ratios=(4, 4, 4, 4),
    depths=(3, 6, 40, 3),
    sr_ratios=(8, 4, 2, 1),
    patch=((7, 4, 3), (3, 2, 1), (3, 2, 1), (3, 2, 1)),  # (kernel, stride, pad) per stage
)


def _im2col(x, kh, kw, stride, pad):
    """x: (B,H,W,C) NHWC -> (B,Ho,Wo, kh*kw*C) with (kh,kw,C) inner ordering."""
    # TODO(synk): im2col patch extraction stays in XLA (overlapping windows not expressible with
    # non-overlapping BlockSpec tiles); duplication factor is small (only 4 patch embeds).
    B, H, W, C = x.shape
    xp = jnp.pad(x, ((0, 0), (pad, pad), (pad, pad), (0, 0)))
    Ho = (H + 2 * pad - kh) // stride + 1
    Wo = (W + 2 * pad - kw) // stride + 1
    cols = []
    for i in range(kh):
        for j in range(kw):
            cols.append(xp[:, i:i + stride * (Ho - 1) + 1:stride,
                            j:j + stride * (Wo - 1) + 1:stride, :])
    patches = jnp.stack(cols, axis=3)  # (B, Ho, Wo, kh*kw, C)
    return patches.reshape(B, Ho, Wo, kh * kw * C), Ho, Wo


@functools.partial(jax.jit, static_argnames=("kernel", "stride", "pad"))
def _patch_embed_jit(x_nhwc, p, kernel, stride, pad):
    B = x_nhwc.shape[0]
    patches, Ho, Wo = _im2col(x_nhwc.astype(BF16), kernel, kernel, stride, pad)
    # conv-as-matmul with the patch-embed LayerNorm fused as epilogue (eps=1e-5, nn.LayerNorm).
    y = fused_matmul(patches.reshape(B * Ho * Wo, -1), p["w"], p["b"],
                     ln_out=(p["ln_g"], p["ln_b"], 1e-5))
    return y.reshape(B, Ho * Wo, -1)


def overlap_patch_embed(x_nhwc, p, kernel, stride, pad):
    B, H, W, _ = x_nhwc.shape
    Ho = (H + 2 * pad - kernel) // stride + 1
    Wo = (W + 2 * pad - kernel) // stride + 1
    return _patch_embed_jit(x_nhwc, p, kernel=kernel, stride=stride, pad=pad), Ho, Wo


@functools.partial(jax.jit, static_argnames=("H", "W", "num_heads", "sr_ratio"))
def transformer_block(x, p, H, W, num_heads, sr_ratio):
    B, N, C = x.shape
    x2 = x.reshape(B * N, C)
    a = p["attn"]
    hd = C // num_heads
    scale = float(hd) ** -0.5

    # ---- efficient self-attention (LN1 fused into projections where possible) ----
    if sr_ratio > 1:
        h = layer_norm(x2, p["ln1_g"], p["ln1_b"], eps=1e-6)   # reused by q and the sr path
        q = fused_matmul(h, a["q_w"], a["q_b"])
        Hk, Wk = H // sr_ratio, W // sr_ratio
        # spatial-reduction conv (kernel = stride = sr): non-overlapping patches -> matmul
        hr = (h.reshape(B, Hk, sr_ratio, Wk, sr_ratio, C)
                .transpose(0, 1, 3, 2, 4, 5)
                .reshape(B * Hk * Wk, sr_ratio * sr_ratio * C))
        xr = fused_matmul(hr, a["sr_w"], a["sr_b"])
        k, v = qkv_matmul(xr, a["kv_w"], a["kv_b"],
                          ln=(a["sr_ln_g"], a["sr_ln_b"], 1e-5), n_out=2)
        Nk = Hk * Wk
    else:
        q, k, v = qkv_matmul(x2, a["qkv_w"], a["qkv_b"],
                             ln=(p["ln1_g"], p["ln1_b"], 1e-6), n_out=3)
        Nk = N

    o = attention_core(q.reshape(B, N, C), k.reshape(B, Nk, C), v.reshape(B, Nk, C),
                       num_heads=num_heads, scale=scale)
    x2 = fused_matmul(o.reshape(B * N, C), a["proj_w"], a["proj_b"], residual=x2)

    # ---- MixFFN: fc1 (LN2 fused) -> dwconv3x3+GELU -> fc2 (+ residual fused) ----
    mp = p["mlp"]
    hid = mp["fc1_w"].shape[1]
    y = fused_matmul(x2, mp["fc1_w"], mp["fc1_b"], ln_in=(p["ln2_g"], p["ln2_b"], 1e-6))
    y = dwconv3x3_gelu(y.reshape(B, H, W, hid), mp["dw_w"], mp["dw_b"]).reshape(B * N, hid)
    x2 = fused_matmul(y, mp["fc2_w"], mp["fc2_b"], residual=x2)
    return x2.reshape(B, N, C)


def mit_backbone(x_nchw, params, cfg=MIT_B5):
    x = jnp.transpose(x_nchw, (0, 2, 3, 1)).astype(BF16)   # NCHW -> NHWC, bf16 activations
    outs = []
    for s in range(4):
        k, stride, pad = cfg["patch"][s]
        sp = params["stages"][s]
        t, H, W = overlap_patch_embed(x, sp["patch_embed"], k, stride, pad)
        for bp in sp["blocks"]:
            t = transformer_block(t, bp, H=H, W=W,
                                  num_heads=cfg["num_heads"][s],
                                  sr_ratio=cfg["sr_ratios"][s])
        B, N, C = t.shape
        t = layer_norm(t.reshape(B * N, C), sp["norm_g"], sp["norm_b"], eps=1e-6)
        x = t.reshape(B, H, W, C)
        outs.append(x)
    return outs


@functools.partial(jax.jit, static_argnames=("num_classes",))
def segformer_head(feats, hp, num_classes=19):
    c1, c2, c3, c4 = feats                                   # NHWC multi-scale features (bf16)
    B, H1, W1, _ = c1.shape
    emb = hp["c1_w"].shape[1]
    embeds = []
    for feat, name in ((c4, "c4"), (c3, "c3"), (c2, "c2"), (c1, "c1")):   # concat order c4..c1
        Bf, Hf, Wf, Cf = feat.shape
        e = fused_matmul(feat.reshape(Bf * Hf * Wf, Cf), hp[name + "_w"], hp[name + "_b"])
        e = e.reshape(Bf, Hf, Wf, emb)
        if (Hf, Wf) != (H1, W1):
            # TODO(synk): bilinear upsample (F.interpolate, align_corners=False) kept in plain JAX
            # (jax.image.resize); gather-style interpolation has no clean block-tiled Pallas form.
            e = jax.image.resize(e, (Bf, H1, W1, emb), method="bilinear")
        embeds.append(e.reshape(B * H1 * W1, emb))
    # linear_fuse: 1x1 conv (bias=False) + eval-mode BN (folded) + ReLU, accumulated over the
    # four K-slices of the concat -> the (M, 4*emb) concat buffer is never materialized in HBM.
    zero_b = jnp.zeros((emb,), F32)
    y = fused_matmul(embeds[0], hp["fuse_w"][0 * emb:1 * emb], hp["fuse_b"])
    y = fused_matmul(embeds[1], hp["fuse_w"][1 * emb:2 * emb], zero_b, residual=y)
    y = fused_matmul(embeds[2], hp["fuse_w"][2 * emb:3 * emb], zero_b, residual=y)
    y = fused_matmul(embeds[3], hp["fuse_w"][3 * emb:4 * emb], zero_b, residual=y, act="relu")
    # Dropout2d(0.1) -> identity.  linear_pred writes a 128-lane-padded buffer, sliced here.
    y = fused_matmul(y, hp["pred_w"], hp["pred_b"])[:, :num_classes]
    y = y.reshape(B, H1, W1, num_classes).astype(F32)
    return jnp.transpose(y, (0, 3, 1, 2))                    # NHWC -> NCHW like PyTorch


def segformer_forward(x_nchw, params, num_classes=19):
    feats = mit_backbone(x_nchw, params)
    return segformer_head(feats, params["head"], num_classes=num_classes)


# ---------------------------------------------------------------------------
# Deterministic synthetic parameter initialisation (shapes follow mit_b5 + SegFormerHead)
# ---------------------------------------------------------------------------
def init_params(key, in_chans=3, num_classes=19, decode_channels=512, cfg=MIT_B5):
    counter = [0]

    def nrm(shape, std=0.02, dtype=BF16):
        counter[0] += 1
        w = std * jax.random.normal(jax.random.fold_in(key, counter[0]), shape, F32)
        return w.astype(dtype)                      # matmul weights stored bf16 (MXU operands)

    def zeros(shape):
        return jnp.zeros(shape, F32)

    def ones(shape):
        return jnp.ones(shape, F32)

    params = {"stages": []}
    prev_c = in_chans
    for s in range(4):
        dim = cfg["embed_dims"][s]
        sr = cfg["sr_ratios"][s]
        hid = dim * cfg["mlp_ratios"][s]
        k = cfg["patch"][s][0]
        stage = {
            "patch_embed": {"w": nrm((k * k * prev_c, dim)), "b": zeros((dim,)),
                            "ln_g": ones((dim,)), "ln_b": zeros((dim,))},
            "blocks": [],
            "norm_g": ones((dim,)), "norm_b": zeros((dim,)),
        }
        for _ in range(cfg["depths"][s]):
            attn = {"proj_w": nrm((dim, dim)), "proj_b": zeros((dim,))}
            if sr > 1:
                # q Linear + kv Linear(dim, 2*dim) (k/v fused along N) + spatial-reduction conv.
                attn.update({"q_w": nrm((dim, dim)), "q_b": zeros((dim,)),
                             "kv_w": nrm((dim, 2 * dim)), "kv_b": zeros((2 * dim,)),
                             "sr_w": nrm((sr * sr * dim, dim)), "sr_b": zeros((dim,)),
                             "sr_ln_g": ones((dim,)), "sr_ln_b": zeros((dim,))})
            else:
                # q and kv Linears fused along N into a single (dim, 3*dim) projection.
                attn.update({"qkv_w": nrm((dim, 3 * dim)), "qkv_b": zeros((3 * dim,))})
            blk = {"ln1_g": ones((dim,)), "ln1_b": zeros((dim,)),
                   "ln2_g": ones((dim,)), "ln2_b": zeros((dim,)),
                   "attn": attn,
                   "mlp": {"fc1_w": nrm((dim, hid)), "fc1_b": zeros((hid,)),
                           "dw_w": nrm((9, hid), dtype=F32), "dw_b": zeros((hid,)),
                           "fc2_w": nrm((hid, dim)), "fc2_b": zeros((dim,))}}
            stage["blocks"].append(blk)
        params["stages"].append(stage)
        prev_c = dim

    emb = decode_channels
    c1, c2, c3, c4 = cfg["embed_dims"]
    bn_scale = (1.0 + 1e-5) ** -0.5   # eval-mode BatchNorm (running stats at init), folded
    npad = ((num_classes + 127) // 128) * 128       # lane-pad the logits projection to 128
    pred_w = jnp.zeros((emb, npad), F32).at[:, :num_classes].set(
        nrm((emb, num_classes), dtype=F32)).astype(BF16)
    params["head"] = {
        "c1_w": nrm((c1, emb)), "c1_b": zeros((emb,)),
        "c2_w": nrm((c2, emb)), "c2_b": zeros((emb,)),
        "c3_w": nrm((c3, emb)), "c3_b": zeros((emb,)),
        "c4_w": nrm((c4, emb)), "c4_b": zeros((emb,)),
        "fuse_w": (nrm((4 * emb, emb), dtype=F32) * bn_scale).astype(BF16),
        "fuse_b": zeros((emb,)),
        "pred_w": pred_w, "pred_b": zeros((npad,)),
    }
    return params


# ---------------------------------------------------------------------------
if __name__ == "__main__":
    key = jax.random.PRNGKey(0)
    params = init_params(jax.random.fold_in(key, 1))
    # Small input consistent with the module: NCHW, 3 channels, 64x64 spatial, batch 2.
    x = jax.random.normal(jax.random.fold_in(key, 2), (2, 3, 64, 64), F32)

    out = segformer_forward(x, params)
    out = jax.block_until_ready(out)
    assert out.shape == (2, 19, 16, 16)          # (B, num_classes, H/4, W/4)
    assert bool(jnp.all(jnp.isfinite(out)))
    print("KERNEL_OK")
</pallas_src>

<mosaic_0001>
module attributes {stable_mosaic.version = 11 : i64} {
  func.func @_mm_kernel(%arg0: i32, %arg1: memref<256x147xbf16, #tpu.memory_space<vmem>>, %arg2: memref<147x64xbf16, #tpu.memory_space<vmem>>, %arg3: memref<1x64xf32, #tpu.memory_space<vmem>>, %arg4: memref<1x64xf32, #tpu.memory_space<vmem>>, %arg5: memref<1x64xf32, #tpu.memory_space<vmem>>, %arg6: memref<256x64xbf16, #tpu.memory_space<vmem>>) attributes {dimension_semantics = [#tpu.dimension_semantics<parallel>], iteration_bounds = array<i64: 2>, scalar_prefetch = 0 : i64, scratch_operands = 0 : i64, tpu.core_type = #tpu.core_type<tc>, window_params = [{transform_indices = @transform_0, window_bounds = array<i64: 256, 147>}, {pipeline_mode = #tpu.pipeline_mode<synchronous>, transform_indices = @transform_1, window_bounds = array<i64: 147, 64>}, {pipeline_mode = #tpu.pipeline_mode<synchronous>, transform_indices = @transform_2, window_bounds = array<i64: 1, 64>}, {pipeline_mode = #tpu.pipeline_mode<synchronous>, transform_indices = @transform_3, window_bounds = array<i64: 1, 64>}, {pipeline_mode = #tpu.pipeline_mode<synchronous>, transform_indices = @transform_4, window_bounds = array<i64: 1, 64>}, {transform_indices = @transform_5, window_bounds = array<i64: 256, 64>}]} {
    %c0 = arith.constant 0 : index
    %c0_0 = arith.constant 0 : index
    %0 = vector.load %arg1[%c0, %c0_0] : memref<256x147xbf16, #tpu.memory_space<vmem>>, vector<256x147xbf16>
    %c0_1 = arith.constant 0 : index
    %c0_2 = arith.constant 0 : index
    %1 = vector.load %arg2[%c0_1, %c0_2] : memref<147x64xbf16, #tpu.memory_space<vmem>>, vector<147x64xbf16>
    %cst = arith.constant dense<0.000000e+00> : vector<256x64xf32>
    %2 = tpu.matmul %0, %1, %cst {dimension_numbers = #tpu.dot_dimension_numbers<[1], [0], [0], [1], [0, 0, 1, 1], [], []>} : vector<256x147xbf16>, vector<147x64xbf16>, vector<256x64xf32> -> vector<256x64xf32>
    %c0_3 = arith.constant 0 : index
    %c0_4 = arith.constant 0 : index
    %3 = vector.load %arg3[%c0_3, %c0_4] : memref<1x64xf32, #tpu.memory_space<vmem>>, vector<1x64xf32>
    %4 = vector.broadcast %3 : vector<1x64xf32> to vector<256x64xf32>
    %5 = arith.addf %2, %4 : vector<256x64xf32>
    %cst_5 = arith.constant dense<0.000000e+00> : vector<256xf32>
    %6 = vector.multi_reduction <add>, %5, %cst_5 [1] : vector<256x64xf32> to vector<256xf32>
    %7 = vector.shape_cast %6 : vector<256xf32> to vector<256x1xf32>
    %cst_6 = arith.constant 6.400000e+01 : f32
    %8 = vector.broadcast %cst_6 : f32 to vector<256x1xf32>
    %9 = arith.divf %7, %8 : vector<256x1xf32>
    %10 = vector.broadcast %9 : vector<256x1xf32> to vector<256x64xf32>
    %11 = arith.subf %5, %10 : vector<256x64xf32>
    %12 = arith.mulf %11, %11 : vector<256x64xf32>
    %cst_7 = arith.constant dense<0.000000e+00> : vector<256xf32>
    %13 = vector.multi_reduction <add>, %12, %cst_7 [1] : vector<256x64xf32> to vector<256xf32>
    %14 = vector.shape_cast %13 : vector<256xf32> to vector<256x1xf32>
    %cst_8 = arith.constant 6.400000e+01 : f32
    %15 = vector.broadcast %cst_8 : f32 to vector<256x1xf32>
    %16 = arith.divf %14, %15 : vector<256x1xf32>
    %cst_9 = arith.constant 9.99999974E-6 : f32
    %17 = vector.broadcast %cst_9 : f32 to vector<256x1xf32>
    %18 = arith.addf %16, %17 : vector<256x1xf32>
    %19 = math.rsqrt %18 : vector<256x1xf32>
    %20 = vector.broadcast %19 : vector<256x1xf32> to vector<256x64xf32>
    %21 = arith.mulf %11, %20 : vector<256x64xf32>
    %c0_10 = arith.constant 0 : index
    %c0_11 = arith.constant 0 : index
    %22 = vector.load %arg4[%c0_10, %c0_11] : memref<1x64xf32, #tpu.memory_space<vmem>>, vector<1x64xf32>
    %23 = vector.broadcast %22 : vector<1x64xf32> to vector<256x64xf32>
    %24 = arith.mulf %21, %23 : vector<256x64xf32>
    %c0_12 = arith.constant 0 : index
    %c0_13 = arith.constant 0 : index
    %25 = vector.load %arg5[%c0_12, %c0_13] : memref<1x64xf32, #tpu.memory_space<vmem>>, vector<1x64xf32>
    %26 = vector.broadcast %25 : vector<1x64xf32> to vector<256x64xf32>
    %27 = arith.addf %24, %26 : vector<256x64xf32>
    %28 = arith.truncf %27 : vector<256x64xf32> to vector<256x64xbf16>
    %c0_14 = arith.constant 0 : index
    %c0_15 = arith.constant 0 : index
    %29 = vector.load %arg6[%c0_14, %c0_15] : memref<256x64xbf16, #tpu.memory_space<vmem>>, vector<256x64xbf16>
    tpu.vector_store %arg6[%c0_14, %c0_15], %28 {strides = array<i32>} : memref<256x64xbf16, #tpu.memory_space<vmem>>, vector<256x64xbf16>,
    return
  }
  func.func @transform_0(%arg0: i32) -> (i32, i32) {
    %c0_i32 = arith.constant 0 : i32
    %c0_i32_0 = arith.constant 0 : i32
    return %arg0, %c0_i32 : i32, i32
  }
  func.func @transform_1(%arg0: i32) -> (i32, i32) {
    %c0_i32 = arith.constant 0 : i32
    %c0_i32_0 = arith.constant 0 : i32
    %c0_i32_1 = arith.constant 0 : i32
    return %c0_i32, %c0_i32_0 : i32, i32
  }
  func.func @transform_2(%arg0: i32) -> (i32, i32) {
    %c0_i32 = arith.constant 0 : i32
    %c0_i32_0 = arith.constant 0 : i32
    %c0_i32_1 = arith.constant 0 : i32
    return %c0_i32, %c0_i32_0 : i32, i32
  }
  func.func @transform_3(%arg0: i32) -> (i32, i32) {
    %c0_i32 = arith.constant 0 : i32
    %c0_i32_0 = arith.constant 0 : i32
    %c0_i32_1 = arith.constant 0 : i32
    return %c0_i32, %c0_i32_0 : i32, i32
  }
  func.func @transform_4(%arg0: i32) -> (i32, i32) {
    %c0_i32 = arith.constant 0 : i32
    %c0_i32_0 = arith.constant 0 : i32
    %c0_i32_1 = arith.constant 0 : i32
    return %c0_i32, %c0_i32_0 : i32, i32
  }
  func.func @transform_5(%arg0: i32) -> (i32, i32) {
    %c0_i32 = arith.constant 0 : i32
    %c0_i32_0 = arith.constant 0 : i32
    return %arg0, %c0_i32 : i32, i32
  }
}

</mosaic_0001>

<llo_original>
// kernel: _fused_matmul_core.1
$region0: #{_fused_matmul_core.1}
  #allocation0 [shape = 'u32[]', space=smem, size = 0x4, offset = 0x4, fixed_abs, tag = 'smem constant byte address 0x4 - core index']
  #allocation1 [shape = 'u32[144,128]{1,0:T(1,128)}', space=vmem, size = 0x12000, scoped, tag = 'internal scratch']
  %s0 = inlined_call_operand.vmem [shape: bf16[512,147], index: 0, kind: input, shape index: {}]
  %s1 = inlined_call_operand.vmem [shape: bf16[147,64], index: 1, kind: input, shape index: {}]
  %s2 = inlined_call_operand.vmem [shape: f32[1,64], index: 2, kind: input, shape index: {}]
  %s3 = inlined_call_operand.vmem [shape: f32[1,64], index: 3, kind: input, shape index: {}]
  %s4 = inlined_call_operand.vmem [shape: f32[1,64], index: 4, kind: input, shape index: {}]
  %s5 = inlined_call_operand.vmem [shape: bf16[512,64], index: 5, kind: output, shape index: {}]
  %s6 = sld [smem:[#allocation0]]
  $region53: #{_fused_matmul_core.1} parent=0
    _
  %s8 = ssub.s32 1, %s6
  %s9 = scalar_select 0, %s8, %s6
  loop: start=0, step=1, limit=4
  $region2: #{_fused_matmul_core.1} parent=0 // loop_pre_header
    _
  $region3: #{_fused_matmul_core.1} parent=0 // loop_header
    %s11 = sphi 0, %s15
    %p12 = scmp.ge.s32.totalorder %s11, 4
    %s21 = sphi 0, %s23
    %s24 = sphi 0, %s21
    %s25 = sphi 0, %s24
    %s41 = sphi 0, %s25
    %s45 = sphi 0, %s45
    %s47 = sphi 0, %s45
    %s48 = sphi 0, %s47
    %s62 = sphi 0, %s48
    %s66 = sphi 0, %s66
    %s68 = sphi 0, %s66
    %s69 = sphi 0, %s68
    %s83 = sphi 0, %s69
    %s87 = sphi 0, %s87
    %s89 = sphi 0, %s87
    %s90 = sphi 0, %s89
    %s104 = sphi 0, %s90
    %s108 = sphi 0, %s108
    %s110 = sphi 0, %s108
    %s111 = sphi 0, %s110
    %s125 = sphi 0, %s111
    %s131 = sphi 0, %s133
    %s134 = sphi 0, %s131
    %s135 = sphi 0, %s134
    %s151 = sphi 0, %s135
  $region4: #{_fused_matmul_core.1} parent=0 // loop_header_branch
    %14 = sbr.rel (%p12) target = $region8
  $region5: #{_fused_matmul_core.1} parent=0 // loop_body
    %s16 = ssub.s32 %s11, 1
    %s17 = ssub.s32 %s11, 2
    %s18 = sadd.s32 %s11, 1
    %s19 = ssub.s32 %s11, %s18
    %p20 = scmp.eq.s32.totalorder %s19, 0
    %s22 = sadd.s32 %s21, 1
    %s23 = scalar_select %p20, %s21, %s22
    %p26 = pneg %p20
    %p27 = scmp.eq.s32.totalorder %s11, 1
    %p28 = por %p26, %p27
    %p29 = scmp.ne.s32.totalorder %s21, %s24
    %p30 = scmp.eq.s32.totalorder %s11, 0
    %p31 = por %p29, %p30
    %p32 = scmp.ne.s32.totalorder %s21, %s24
    %p33 = scmp.eq.s32.totalorder %s16, 1
    %p34 = por %p32, %p33
    %p35 = scmp.ne.s32.totalorder %s24, %s25
    %p36 = scmp.eq.s32.totalorder %s16, 0
    %p37 = por %p35, %p36
    %p38 = scmp.ne.s32.totalorder %s24, %s25
    %p39 = scmp.eq.s32.totalorder %s17, 1
    %p40 = por %p38, %p39
    %p42 = scmp.ne.s32.totalorder %s25, %s41
    %p43 = scmp.eq.s32.totalorder %s17, 0
    %p44 = por %p42, %p43
    %s46 = sadd.s32 %s45, 1
    %p49 = scmp.eq.s32.totalorder %s11, 1
    %p50 = scmp.ne.s32.totalorder %s45, %s47
    %p51 = scmp.eq.s32.totalorder %s11, 0
    %p52 = por %p50, %p51
    %p53 = scmp.ne.s32.totalorder %s45, %s47
    %p54 = scmp.eq.s32.totalorder %s16, 1
    %p55 = por %p53, %p54
    %p56 = scmp.ne.s32.totalorder %s47, %s48
    %p57 = scmp.eq.s32.totalorder %s16, 0
    %p58 = por %p56, %p57
    %p59 = scmp.ne.s32.totalorder %s47, %s48
    %p60 = scmp.eq.s32.totalorder %s17, 1
    %p61 = por %p59, %p60
    %p63 = scmp.ne.s32.totalorder %s48, %s62
    %p64 = scmp.eq.s32.totalorder %s17, 0
    %p65 = por %p63, %p64
    %s67 = sadd.s32 %s66, 1
    %p70 = scmp.eq.s32.totalorder %s11, 1
    %p71 = scmp.ne.s32.totalorder %s66, %s68
    %p72 = scmp.eq.s32.totalorder %s11, 0
    %p73 = por %p71, %p72
    %p74 = scmp.ne.s32.totalorder %s66, %s68
    %p75 = scmp.eq.s32.totalorder %s16, 1
    %p76 = por %p74, %p75
    %p77 = scmp.ne.s32.totalorder %s68, %s69
    %p78 = scmp.eq.s32.totalorder %s16, 0
    %p79 = por %p77, %p78
    %p80 = scmp.ne.s32.totalorder %s68, %s69
    %p81 = scmp.eq.s32.totalorder %s17, 1
    %p82 = por %p80, %p81
    %p84 = scmp.ne.s32.totalorder %s69, %s83
    %p85 = scmp.eq.s32.totalorder %s17, 0
    %p86 = por %p84, %p85
    %s88 = sadd.s32 %s87, 1
    %p91 = scmp.eq.s32.totalorder %s11, 1
    %p92 = scmp.ne.s32.totalorder %s87, %s89
    %p93 = scmp.eq.s32.totalorder %s11, 0
    %p94 = por %p92, %p93
    %p95 = scmp.ne.s32.totalorder %s87, %s89
    %p96 = scmp.eq.s32.totalorder %s16, 1
    %p97 = por %p95, %p96
    %p98 = scmp.ne.s32.totalorder %s89, %s90
    %p99 = scmp.eq.s32.totalorder %s16, 0
    %p100 = por %p98, %p99
    %p101 = scmp.ne.s32.totalorder %s89, %s90
    %p102 = scmp.eq.s32.totalorder %s17, 1
    %p103 = por %p101, %p102
    %p105 = scmp.ne.s32.totalorder %s90, %s104
    %p106 = scmp.eq.s32.totalorder %s17, 0
    %p107 = por %p105, %p106
    %s109 = sadd.s32 %s108, 1
    %p112 = scmp.eq.s32.totalorder %s11, 1
    %p113 = scmp.ne.s32.totalorder %s108, %s110
    %p114 = scmp.eq.s32.totalorder %s11, 0
    %p115 = por %p113, %p114
    %p116 = scmp.ne.s32.totalorder %s108, %s110
    %p117 = scmp.eq.s32.totalorder %s16, 1
    %p118 = por %p116, %p117
    %p119 = scmp.ne.s32.totalorder %s110, %s111
    %p120 = scmp.eq.s32.totalorder %s16, 0
    %p121 = por %p119, %p120
    %p122 = scmp.ne.s32.totalorder %s110, %s111
    %p123 = scmp.eq.s32.totalorder %s17, 1
    %p124 = por %p122, %p123
    %p126 = scmp.ne.s32.totalorder %s111, %s125
    %p127 = scmp.eq.s32.totalorder %s17, 0
    %p128 = por %p126, %p127
    %s129 = ssub.s32 %s11, %s18
    %p130 = scmp.eq.s32.totalorder %s129, 0
    %s132 = sadd.s32 %s131, 1
    %s133 = scalar_select %p130, %s131, %s132
    %p136 = pneg %p130
    %p137 = scmp.eq.s32.totalorder %s11, 1
    %p138 = por %p136, %p137
    %p139 = scmp.ne.s32.totalorder %s131, %s134
    %p140 = scmp.eq.s32.totalorder %s11, 0
    %p141 = por %p139, %p140
    %p142 = scmp.ne.s32.totalorder %s131, %s134
    %p143 = scmp.eq.s32.totalorder %s16, 1
    %p144 = por %p142, %p143
    %p145 = scmp.ne.s32.totalorder %s134, %s135
    %p146 = scmp.eq.s32.totalorder %s16, 0
    %p147 = por %p145, %p146
    %p148 = scmp.ne.s32.totalorder %s134, %s135
    %p149 = scmp.eq.s32.totalorder %s17, 1
    %p150 = por %p148, %p149
    %p152 = scmp.ne.s32.totalorder %s135, %s151
    %p153 = scmp.eq.s32.totalorder %s17, 0
    %p154 = por %p152, %p153
    %p155 = scmp.le.s32.totalorder 1, %s11
    %p156 = scmp.lt.s32.totalorder %s11, 3
    %p157 = pnand %p155, %p156
    %p158 = pneg %p157
    // Predicated region
    $region9: #{_fused_matmul_core.1} parent=5 // pred_check
      _
    $region10: #{_fused_matmul_core.1} parent=5 // pred_check_branch
      %160 = sbr.rel (%p157) target = $region12
    $region11: #{_fused_matmul_core.1} parent=5 // pred_region
      %s161 = ssub.s32 %s11, 1
      // Predicated region
      $region13: #{_fused_matmul_core.1} parent=11 // pred_check
        %p162 = pneg %p58
      $region14: #{_fused_matmul_core.1} parent=11 // pred_check_branch
        %164 = sbr.rel (%p162) target = $region16
      $region15: #{_fused_matmul_core.1} parent=11 // pred_region
        _
      $region16: #{_fused_matmul_core.1} parent=11 // pred_fallthru
        _
      // Predicated region
      $region17: #{_fused_matmul_core.1} parent=11 // pred_check
        %p165 = pneg %p79
      $region18: #{_fused_matmul_core.1} parent=11 // pred_check_branch
        %167 = sbr.rel (%p165) target = $region20
      $region19: #{_fused_matmul_core.1} parent=11 // pred_region
        _
      $region20: #{_fused_matmul_core.1} parent=11 // pred_fallthru
        _
      // Predicated region
      $region21: #{_fused_matmul_core.1} parent=11 // pred_check
        %p168 = pneg %p100
      $region22: #{_fused_matmul_core.1} parent=11 // pred_check_branch
        %170 = sbr.rel (%p168) target = $region24
      $region23: #{_fused_matmul_core.1} parent=11 // pred_region
        _
      $region24: #{_fused_matmul_core.1} parent=11 // pred_fallthru
        _
      // Predicated region
      $region25: #{_fused_matmul_core.1} parent=11 // pred_check
        %p171 = pneg %p121
      $region26: #{_fused_matmul_core.1} parent=11 // pred_check_branch
        %173 = sbr.rel (%p171) target = $region28
      $region27: #{_fused_matmul_core.1} parent=11 // pred_region
        _
      $region28: #{_fused_matmul_core.1} parent=11 // pred_fallthru
        _
    $region12: #{_fused_matmul_core.1} parent=5 // pred_fallthru
      _
    %p174 = scmp.lt.s32.totalorder %s11, 2
    // Predicated region
    $region29: #{_fused_matmul_core.1} parent=5 // pred_check
      %p175 = pneg %p174
    $region30: #{_fused_matmul_core.1} parent=5 // pred_check_branch
      %177 = sbr.rel (%p175) target = $region32
    $region31: #{_fused_matmul_core.1} parent=5 // pred_region
      // Predicated region
      $region33: #{_fused_matmul_core.1} parent=31 // pred_check
        %p178 = pneg %p31
      $region34: #{_fused_matmul_core.1} parent=31 // pred_check_branch
        %180 = sbr.rel (%p178) target = $region36
      $region35: #{_fused_matmul_core.1} parent=31 // pred_region
        %s181 = smul.u32 32, %s11
        %p182 = scmp.lt.s32.totalorder %s181, 63
        %s183 = scalar_select %p182, %s181, 63
        %s184 = smul.addr %s183, 2
        %s185 = smul.addr %s184, 4
        %s186 = scalar_lea.vmem %s0, %s185
        %s187 = smul.u32 32, %s11
      $region36: #{_fused_matmul_core.1} parent=31 // pred_fallthru
        _
    $region32: #{_fused_matmul_core.1} parent=5 // pred_fallthru
      _
    %p188 = scmp.le.s32.totalorder 1, %s11
    %p189 = scmp.lt.s32.totalorder %s11, 3
    %p190 = pnand %p188, %p189
    %p191 = pneg %p190
    // Predicated region
    $region37: #{_fused_matmul_core.1} parent=5 // pred_check
      _
    $region38: #{_fused_matmul_core.1} parent=5 // pred_check_branch
      %193 = sbr.rel (%p190) target = $region40
    $region39: #{_fused_matmul_core.1} parent=5 // pred_region
      %s194 = ssub.s32 %s11, 1
      %s195 = smul.u32 32, %s16
      %p196 = scmp.lt.s32.totalorder %s195, 63
      %s197 = scalar_select %p196, %s195, 63
      %s198 = smul.addr %s197, 2
      %s199 = smul.addr %s198, 4
      %s200 = scalar_lea.vmem %s0, %s199
      %p201 = pneg %p37
      %p202 = pneg %p34
      %p203 = pneg %p58
      %p204 = pneg %p55
      %p205 = pneg %p79
      %p206 = pneg %p76
      %p207 = pneg %p100
      %p208 = pneg %p97
      %p209 = pneg %p121
      %p210 = pneg %p118
      %p211 = pneg %p147
      %p212 = pneg %p144
      %s213 = smul.u32 32, %s16
      %p214 = scmp.lt.s32.totalorder %s213, 63
      %s215 = scalar_select %p214, %s213, 63
      %s216 = smul.addr %s215, 4
      %s217 = scalar_lea.vmem %s5, %s216
      %s218 = smul.u32 32, %s16
      %p219 = scmp.lt.s32.totalorder %s218, 63
      %s220 = scalar_select %p219, %s218, 63
      %s221 = smul.addr %s220, 2
      %s222 = smul.addr %s221, 4
      %s223 = scalar_lea.vmem %s0, %s222
      %s224 = smul.u32 32, %s16
      %s225 = smul.u32 32, %s16
      %p226 = scmp.lt.s32.totalorder %s225, 63
      %s227 = scalar_select %p226, %s225, 63
      %s228 = smul.addr %s227, 4
      %s229 = scalar_lea.vmem %s5, %s228
      %s230 = smul.u32 32, %s16
      %v232 = vld [vmem:[%s223] sm:$0xff]
      %v233 = vld [vmem:[%s223 + $0x8] sm:$0xff]
      %v234 = vld [vmem:[%s223 + $0x10] sm:$0xff]
      %v235 = vld [vmem:[%s223 + $0x18] sm:$0xff]
      %v236 = vld [vmem:[%s223 + $0x20] sm:$0xff]
      %v237 = vld [vmem:[%s223 + $0x28] sm:$0xff]
      %v238 = vld [vmem:[%s223 + $0x30] sm:$0xff]
      %v239 = vld [vmem:[%s223 + $0x38] sm:$0xff]
      %v240 = vld [vmem:[%s223 + $0x40] sm:$0xff]
      %v241 = vld [vmem:[%s223 + $0x48] sm:$0xff]
      %v242 = vld [vmem:[%s223 + $0x50] sm:$0xff]
      %v243 = vld [vmem:[%s223 + $0x58] sm:$0xff]
      %v244 = vld [vmem:[%s223 + $0x60] sm:$0xff]
      %v245 = vld [vmem:[%s223 + $0x68] sm:$0xff]
      %v246 = vld [vmem:[%s223 + $0x70] sm:$0xff]
      %v247 = vld [vmem:[%s223 + $0x78] sm:$0xff]
      %v248 = vld [vmem:[%s223 + $0x80] sm:$0xff]
      %v249 = vld [vmem:[%s223 + $0x88] sm:$0xff]
      %v250 = vld [vmem:[%s223 + $0x90] sm:$0xff]
      %v251 = vld [vmem:[%s223 + $0x98] sm:$0xff]
      %v252 = vld [vmem:[%s223 + $0xa0] sm:$0xff]
      %v253 = vld [vmem:[%s223 + $0xa8] sm:$0xff]
      %v254 = vld [vmem:[%s223 + $0xb0] sm:$0xff]
      %v255 = vld [vmem:[%s223 + $0xb8] sm:$0xff]
      %v256 = vld [vmem:[%s223 + $0xc0] sm:$0xff]
      %v257 = vld [vmem:[%s223 + $0xc8] sm:$0xff]
      %v258 = vld [vmem:[%s223 + $0xd0] sm:$0xff]
      %v259 = vld [vmem:[%s223 + $0xd8] sm:$0xff]
      %v260 = vld [vmem:[%s223 + $0xe0] sm:$0xff]
      %v261 = vld [vmem:[%s223 + $0xe8] sm:$0xff]
      %v262 = vld [vmem:[%s223 + $0xf0] sm:$0xff]
      %v263 = vld [vmem:[%s223 + $0xf8] sm:$0xff]
      %v264 = vld [vmem:[%s1] sm:$0xf]
      %v265 = vld [vmem:[%s1 + $0x4] sm:$0xf]
      %v266 = vld [vmem:[%s1 + $0x8] sm:$0xf]
      %v267 = vld [vmem:[%s1 + $0xc] sm:$0xf]
      %v268 = vld [vmem:[%s1 + $0x10] sm:$0xf]
      %v269 = vld [vmem:[%s1 + $0x14] sm:$0xf]
      %v270 = vld [vmem:[%s1 + $0x18] sm:$0xf]
      %v271 = vld [vmem:[%s1 + $0x1c] sm:$0xf]
      %v272 = vld [vmem:[%s1 + $0x20] sm:$0xf]
      %v273 = vld [vmem:[%s1 + $0x24] sm:$0xf]
      %v274 = vld [vmem:[%s1 + $0x28] sm:$0xf]
      %v275 = vld [vmem:[%s1 + $0x2c] sm:$0xf]
      %v276 = vld [vmem:[%s1 + $0x30] sm:$0xf]
      %v277 = vld [vmem:[%s1 + $0x34] sm:$0xf]
      %v278 = vld [vmem:[%s1 + $0x38] sm:$0xf]
      %v279 = vld [vmem:[%s1 + $0x3c] sm:$0xf]
      %v280 = vld [vmem:[%s1 + $0x40] sm:$0xf]
      %v281 = vld [vmem:[%s1 + $0x44] sm:$0xf]
      %v282 = vld [vmem:[%s1 + $0x48] sm:$0x3]
      %v283 = vld [vmem:[%s2] sm:$0x1]
      %v285 = vlaneseq
      %v286 = vshrl.u32 %v285, 7
      %v287 = vsub.s32 0, %v286
      %v288 = vrot.slane %v283, %v287
      %v322 = vunpack.c.l.b16 %v232
      %v323 = vunpack.c.h.b16 %v232
      %v324 = vunpack.c.l.b16 %v233
      %v325 = vunpack.c.h.b16 %v233
      %v326 = vunpack.c.l.b16 %v234
      %v327 = vunpack.c.h.b16 %v234
      %v328 = vunpack.c.l.b16 %v235
      %v329 = vunpack.c.h.b16 %v235
      %v330 = vunpack.c.l.b16 %v236
      %v331 = vunpack.c.h.b16 %v236
      %v332 = vunpack.c.l.b16 %v237
      %v333 = vunpack.c.h.b16 %v237
      %v334 = vunpack.c.l.b16 %v238
      %v335 = vunpack.c.h.b16 %v238
      %v336 = vunpack.c.l.b16 %v239
      %v337 = vunpack.c.h.b16 %v239
      %v338 = vunpack.c.l.b16 %v240
      %v339 = vunpack.c.h.b16 %v240
      %v340 = vunpack.c.l.b16 %v241
      %v341 = vunpack.c.h.b16 %v241
      %v342 = vunpack.c.l.b16 %v242
      %v343 = vunpack.c.h.b16 %v242
      %v344 = vunpack.c.l.b16 %v243
      %v345 = vunpack.c.h.b16 %v243
      %v346 = vunpack.c.l.b16 %v244
      %v347 = vunpack.c.h.b16 %v244
      %v348 = vunpack.c.l.b16 %v245
      %v349 = vunpack.c.h.b16 %v245
      %v350 = vunpack.c.l.b16 %v246
      %v351 = vunpack.c.h.b16 %v246
      %v352 = vunpack.c.l.b16 %v247
      %v353 = vunpack.c.h.b16 %v247
      %v354 = vunpack.c.l.b16 %v248
      %v355 = vunpack.c.h.b16 %v248
      %v356 = vunpack.c.l.b16 %v249
      %v357 = vunpack.c.h.b16 %v249
      %v358 = vunpack.c.l.b16 %v250
      %v359 = vunpack.c.h.b16 %v250
      %v360 = vunpack.c.l.b16 %v251
      %v361 = vunpack.c.h.b16 %v251
      %v362 = vunpack.c.l.b16 %v252
      %v363 = vunpack.c.h.b16 %v252
      %v364 = vunpack.c.l.b16 %v253
      %v365 = vunpack.c.h.b16 %v253
      %v366 = vunpack.c.l.b16 %v254
      %v367 = vunpack.c.h.b16 %v254
      %v368 = vunpack.c.l.b16 %v255
      %v369 = vunpack.c.h.b16 %v255
      %v370 = vunpack.c.l.b16 %v256
      %v371 = vunpack.c.h.b16 %v256
      %v372 = vunpack.c.l.b16 %v257
      %v373 = vunpack.c.h.b16 %v257
      %v374 = vunpack.c.l.b16 %v258
      %v375 = vunpack.c.h.b16 %v258
      %v376 = vunpack.c.l.b16 %v259
      %v377 = vunpack.c.h.b16 %v259
      %v378 = vunpack.c.l.b16 %v260
      %v379 = vunpack.c.h.b16 %v260
      %v380 = vunpack.c.l.b16 %v261
      %v381 = vunpack.c.h.b16 %v261
      %v382 = vunpack.c.l.b16 %v262
      %v383 = vunpack.c.h.b16 %v262
      %v384 = vunpack.c.l.b16 %v263
      %v385 = vunpack.c.h.b16 %v263
      %v386 = vpack.c.b16 %v324, %v322
      %v387 = vpack.c.b16 %v325, %v323
      %v388 = vpack.c.b16 %v328, %v326
      %v389 = vpack.c.b16 %v329, %v327
      %v390 = vpack.c.b16 %v332, %v330
      %v391 = vpack.c.b16 %v333, %v331
      %v392 = vpack.c.b16 %v336, %v334
      %v393 = vpack.c.b16 %v337, %v335
      %v394 = vpack.c.b16 %v340, %v338
      %v395 = vpack.c.b16 %v341, %v339
      %v396 = vpack.c.b16 %v344, %v342
      %v397 = vpack.c.b16 %v345, %v343
      %v398 = vpack.c.b16 %v348, %v346
      %v399 = vpack.c.b16 %v349, %v347
      %v400 = vpack.c.b16 %v352, %v350
      %v401 = vpack.c.b16 %v353, %v351
      %v402 = vpack.c.b16 %v356, %v354
      %v403 = vpack.c.b16 %v357, %v355
      %v404 = vpack.c.b16 %v360, %v358
      %v405 = vpack.c.b16 %v361, %v359
      %v406 = vpack.c.b16 %v364, %v362
      %v407 = vpack.c.b16 %v365, %v363
      %v408 = vpack.c.b16 %v368, %v366
      %v409 = vpack.c.b16 %v369, %v367
      %v410 = vpack.c.b16 %v372, %v370
      %v411 = vpack.c.b16 %v373, %v371
      %v412 = vpack.c.b16 %v376, %v374
      %v413 = vpack.c.b16 %v377, %v375
      %v414 = vpack.c.b16 %v380, %v378
      %v415 = vpack.c.b16 %v381, %v379
      %v416 = vpack.c.b16 %v384, %v382
      %v417 = vpack.c.b16 %v385, %v383
      %v453 = vunpack.c.l.b16 %v264
      %v454 = vunpack.c.l.b16 %v265
      %v455 = vunpack.c.l.b16 %v266
      %v456 = vunpack.c.l.b16 %v267
      %v457 = vunpack.c.l.b16 %v268
      %v458 = vunpack.c.l.b16 %v269
      %v459 = vunpack.c.l.b16 %v270
      %v460 = vunpack.c.l.b16 %v271
      %v461 = vunpack.c.l.b16 %v272
      %v462 = vunpack.c.l.b16 %v273
      %v463 = vunpack.c.l.b16 %v274
      %v464 = vunpack.c.l.b16 %v275
      %v465 = vunpack.c.l.b16 %v276
      %v466 = vunpack.c.l.b16 %v277
      %v467 = vunpack.c.l.b16 %v278
      %v468 = vunpack.c.l.b16 %v279
      %v469 = vunpack.c.l.b16 %v280
      %v470 = vunpack.c.l.b16 %v281
      %v471 = vunpack.c.l.b16 %v282
      %v472 = vpack.c.b16 %v454, %v453
      %v473 = vpack.c.b16 %v456, %v455
      %v474 = vpack.c.b16 %v458, %v457
      %v475 = vpack.c.b16 %v460, %v459
      %v476 = vpack.c.b16 %v462, %v461
      %v477 = vpack.c.b16 %v464, %v463
      %v478 = vpack.c.b16 %v466, %v465
      %v479 = vpack.c.b16 %v468, %v467
      %v480 = vpack.c.b16 %v470, %v469
      %v481 = vpack.c.b16 %v471, %v471
      %vm491 = vcmask 154624
      %v493 = vsel %vm491, %v387, 0
      %v496 = vsel %vm491, %v389, 0
      %v499 = vsel %vm491, %v391, 0
      %v502 = vsel %vm491, %v393, 0
      %v505 = vsel %vm491, %v395, 0
      %v508 = vsel %vm491, %v397, 0
      %v511 = vsel %vm491, %v399, 0
      %v514 = vsel %vm491, %v401, 0
      %v517 = vsel %vm491, %v403, 0
      %v520 = vsel %vm491, %v405, 0
      %v523 = vsel %vm491, %v407, 0
      %v526 = vsel %vm491, %v409, 0
      %v529 = vsel %vm491, %v411, 0
      %v532 = vsel %vm491, %v413, 0
      %v535 = vsel %vm491, %v415, 0
      %v538 = vsel %vm491, %v417, 0
      %vm540 = vcmask 1040384
      %vm541 = vcmask 1041408
      %v542 = vsel %vm540, 4294967295, 65535
      %v543 = vsel %vm541, %v542, 0
      %v545 = vand.u32 %v481, %v543
      %547 = vmatprep.subr.bf16.mxu0 0
      %548 = vmatpush1.bf16.msra.mxu0 %v479
      %549 = vmatprep.subr.bf16.mxu0 0
      %550 = vmatpush1.bf16.msra.mxu0 %v478
      %551 = vmatprep.subr.bf16.mxu0 0
      %552 = vmatpush1.bf16.msra.mxu0 %v477
      %553 = vmatprep.subr.bf16.mxu0 0
      %554 = vmatpush1.bf16.msra.mxu0 %v476
      %555 = vmatprep.subr.bf16.mxu0 0
      %556 = vmatpush1.bf16.msra.mxu0 %v475
      %557 = vmatprep.subr.bf16.mxu0 0
      %558 = vmatpush1.bf16.msra.mxu0 %v474
      %559 = vmatprep.subr.bf16.mxu0 0
      %560 = vmatpush1.bf16.msra.mxu0 %v473
      %561 = vmatprep.subr.bf16.mxu0 0
      %562 = vmatpush1.bf16.msra.mxu0 %v472
      %563 = vmatprep.subr.bf16.mxu0 0
      %564 = vmatpush2.bf16.msra.mxu0 0
      %565 = vmatprep.subr.bf16.mxu0 0
      %566 = vmatpush2.bf16.msra.mxu0 0
      %567 = vmatprep.subr.bf16.mxu0 0
      %568 = vmatpush2.bf16.msra.mxu0 0
      %569 = vmatprep.subr.bf16.mxu0 0
      %570 = vmatpush2.bf16.msra.mxu0 0
      %571 = vmatprep.subr.bf16.mxu0 0
      %572 = vmatpush2.bf16.msra.mxu0 0
      %573 = vmatprep.subr.bf16.mxu0 0
      %574 = vmatpush2.bf16.msra.mxu0 0
      %575 = vmatprep.subr.bf16.mxu0 0
      %576 = vmatpush2.bf16.msra.mxu0 %v545
      %577 = vmatprep.subr.bf16.mxu0 0
      %578 = vmatpush2.bf16.msra.mxu0 %v480
      %579 = vmatprep.mubr.bf16.mxu0 %v493
      %580 = vmatmul.mubr.bf16.gmra.mxu0 %v386
      %v581 = vpop.f32.mrf.mxu0
      %v582 = vadd.f32 %v288, %v581
      %v583 = vpop.f32.mrf.mxu0
      %v584 = vpop.f32.mrf.mxu0
      %v585 = vadd.f32 %v288, %v584
      %v586 = vpop.f32.mrf.mxu0
      %587 = vmatprep.mubr.bf16.mxu0 %v496
      %588 = vmatmul.mubr.bf16.gmra.mxu0 %v388
      %v589 = vpop.f32.mrf.mxu0
      %v590 = vadd.f32 %v288, %v589
      %v591 = vpop.f32.mrf.mxu0
      %v592 = vpop.f32.mrf.mxu0
      %v593 = vadd.f32 %v288, %v592
      %v594 = vpop.f32.mrf.mxu0
      %595 = vmatprep.mubr.bf16.mxu0 %v499
      %596 = vmatmul.mubr.bf16.gmra.mxu0 %v390
      %v597 = vpop.f32.mrf.mxu0
      %v598 = vadd.f32 %v288, %v597
      %v599 = vpop.f32.mrf.mxu0
      %v600 = vpop.f32.mrf.mxu0
      %v601 = vadd.f32 %v288, %v600
      %v602 = vpop.f32.mrf.mxu0
      %603 = vmatprep.mubr.bf16.mxu0 %v502
      %604 = vmatmul.mubr.bf16.gmra.mxu0 %v392
      %v605 = vpop.f32.mrf.mxu0
      %v606 = vadd.f32 %v288, %v605
      %v607 = vpop.f32.mrf.mxu0
      %v608 = vpop.f32.mrf.mxu0
      %v609 = vadd.f32 %v288, %v608
      %v610 = vpop.f32.mrf.mxu0
      %611 = vmatprep.mubr.bf16.mxu0 %v505
      %612 = vmatmul.mubr.bf16.gmra.mxu0 %v394
      %v613 = vpop.f32.mrf.mxu0
      %v614 = vadd.f32 %v288, %v613
      %v615 = vpop.f32.mrf.mxu0
      %v616 = vpop.f32.mrf.mxu0
      %v617 = vadd.f32 %v288, %v616
      %v618 = vpop.f32.mrf.mxu0
      %619 = vmatprep.mubr.bf16.mxu0 %v508
      %620 = vmatmul.mubr.bf16.gmra.mxu0 %v396
      %v621 = vpop.f32.mrf.mxu0
      %v622 = vadd.f32 %v288, %v621
      %v623 = vpop.f32.mrf.mxu0
      %v624 = vpop.f32.mrf.mxu0
      %v625 = vadd.f32 %v288, %v624
      %v626 = vpop.f32.mrf.mxu0
      %627 = vmatprep.mubr.bf16.mxu0 %v511
      %628 = vmatmul.mubr.bf16.gmra.mxu0 %v398
      %v629 = vpop.f32.mrf.mxu0
      %v630 = vadd.f32 %v288, %v629
      %v631 = vpop.f32.mrf.mxu0
      %v632 = vpop.f32.mrf.mxu0
      %v633 = vadd.f32 %v288, %v632
      %v634 = vpop.f32.mrf.mxu0
      %635 = vmatprep.mubr.bf16.mxu0 %v514
      %636 = vmatmul.mubr.bf16.gmra.mxu0 %v400
      %v637 = vpop.f32.mrf.mxu0
      %v638 = vadd.f32 %v288, %v637
      %v639 = vpop.f32.mrf.mxu0
      %v640 = vpop.f32.mrf.mxu0
      %v641 = vadd.f32 %v288, %v640
      %v642 = vpop.f32.mrf.mxu0
      %643 = vmatprep.mubr.bf16.mxu0 %v517
      %644 = vmatmul.mubr.bf16.gmra.mxu0 %v402
      %v645 = vpop.f32.mrf.mxu0
      %v646 = vadd.f32 %v288, %v645
      %v647 = vpop.f32.mrf.mxu0
      %v648 = vpop.f32.mrf.mxu0
      %v649 = vadd.f32 %v288, %v648
      %v650 = vpop.f32.mrf.mxu0
      %651 = vmatprep.mubr.bf16.mxu0 %v520
      %652 = vmatmul.mubr.bf16.gmra.mxu0 %v404
      %v653 = vpop.f32.mrf.mxu0
      %v654 = vadd.f32 %v288, %v653
      %v655 = vpop.f32.mrf.mxu0
      %v656 = vpop.f32.mrf.mxu0
      %v657 = vadd.f32 %v288, %v656
      %v658 = vpop.f32.mrf.mxu0
      %659 = vmatprep.mubr.bf16.mxu0 %v523
      %660 = vmatmul.mubr.bf16.gmra.mxu0 %v406
      %v661 = vpop.f32.mrf.mxu0
      %v662 = vadd.f32 %v288, %v661
      %v663 = vpop.f32.mrf.mxu0
      %v664 = vpop.f32.mrf.mxu0
      %v665 = vadd.f32 %v288, %v664
      %v666 = vpop.f32.mrf.mxu0
      %667 = vmatprep.mubr.bf16.mxu0 %v526
      %668 = vmatmul.mubr.bf16.gmra.mxu0 %v408
      %v669 = vpop.f32.mrf.mxu0
      %v670 = vadd.f32 %v288, %v669
      %v671 = vpop.f32.mrf.mxu0
      %v672 = vpop.f32.mrf.mxu0
      %v673 = vadd.f32 %v288, %v672
      %v674 = vpop.f32.mrf.mxu0
      %675 = vmatprep.mubr.bf16.mxu0 %v529
      %676 = vmatmul.mubr.bf16.gmra.mxu0 %v410
      %v677 = vpop.f32.mrf.mxu0
      %v678 = vadd.f32 %v288, %v677
      %v679 = vpop.f32.mrf.mxu0
      %v680 = vpop.f32.mrf.mxu0
      %v681 = vadd.f32 %v288, %v680
      %v682 = vpop.f32.mrf.mxu0
      %683 = vmatprep.mubr.bf16.mxu0 %v532
      %684 = vmatmul.mubr.bf16.gmra.mxu0 %v412
      %v685 = vpop.f32.mrf.mxu0
      %v686 = vadd.f32 %v288, %v685
      %v687 = vpop.f32.mrf.mxu0
      %v688 = vpop.f32.mrf.mxu0
      %v689 = vadd.f32 %v288, %v688
      %v690 = vpop.f32.mrf.mxu0
      %691 = vmatprep.mubr.bf16.mxu0 %v535
      %692 = vmatmul.mubr.bf16.gmra.mxu0 %v414
      %v693 = vpop.f32.mrf.mxu0
      %v694 = vadd.f32 %v288, %v693
      %v695 = vpop.f32.mrf.mxu0
      %v696 = vpop.f32.mrf.mxu0
      %v697 = vadd.f32 %v288, %v696
      %v698 = vpop.f32.mrf.mxu0
      %699 = vmatprep.mubr.bf16.mxu0 %v538
      %700 = vmatmul.mubr.bf16.gmra.mxu0 %v416
      %v701 = vpop.f32.mrf.mxu0
      %v702 = vadd.f32 %v288, %v701
      %v703 = vpop.f32.mrf.mxu0
      %v704 = vpop.f32.mrf.mxu0
      %v705 = vadd.f32 %v288, %v704
      %v706 = vpop.f32.mrf.mxu0
      %707 = vdwg.mxu0
      %vm708 = vcmask 523264
      %v709 = vsel %vm708, %v582, 0.0
      %710 = vadd.xlane.f32.xlu0 %v709
      %v711 = vpop.xlane.xlu0 %710
      %v712 = vsel %vm708, %v585, 0.0
      %713 = vadd.xlane.f32.xlu0 %v712
      %v714 = vpop.xlane.xlu0 %713
      %v715 = vsel %vm708, %v590, 0.0
      %716 = vadd.xlane.f32.xlu0 %v715
      %v717 = vpop.xlane.xlu0 %716
      %v718 = vsel %vm708, %v593, 0.0
      %719 = vadd.xlane.f32.xlu0 %v718
      %v720 = vpop.xlane.xlu0 %719
      %v721 = vsel %vm708, %v598, 0.0
      %722 = vadd.xlane.f32.xlu0 %v721
      %v723 = vpop.xlane.xlu0 %722
      %v724 = vsel %vm708, %v601, 0.0
      %725 = vadd.xlane.f32.xlu0 %v724
      %v726 = vpop.xlane.xlu0 %725
      %v727 = vsel %vm708, %v606, 0.0
      %728 = vadd.xlane.f32.xlu0 %v727
      %v729 = vpop.xlane.xlu0 %728
      %v730 = vsel %vm708, %v609, 0.0
      %731 = vadd.xlane.f32.xlu0 %v730
      %v732 = vpop.xlane.xlu0 %731
      %v733 = vsel %vm708, %v614, 0.0
      %734 = vadd.xlane.f32.xlu0 %v733
      %v735 = vpop.xlane.xlu0 %734
      %v736 = vsel %vm708, %v617, 0.0
      %737 = vadd.xlane.f32.xlu0 %v736
      %v738 = vpop.xlane.xlu0 %737
      %v739 = vsel %vm708, %v622, 0.0
      %740 = vadd.xlane.f32.xlu0 %v739
      %v741 = vpop.xlane.xlu0 %740
      %v742 = vsel %vm708, %v625, 0.0
      %743 = vadd.xlane.f32.xlu0 %v742
      %v744 = vpop.xlane.xlu0 %743
      %v745 = vsel %vm708, %v630, 0.0
      %746 = vadd.xlane.f32.xlu0 %v745
      %v747 = vpop.xlane.xlu0 %746
      %v748 = vsel %vm708, %v633, 0.0
      %749 = vadd.xlane.f32.xlu0 %v748
      %v750 = vpop.xlane.xlu0 %749
      %v751 = vsel %vm708, %v638, 0.0
      %752 = vadd.xlane.f32.xlu0 %v751
      %v753 = vpop.xlane.xlu0 %752
      %v754 = vsel %vm708, %v641, 0.0
      %755 = vadd.xlane.f32.xlu0 %v754
      %v756 = vpop.xlane.xlu0 %755
      %v757 = vsel %vm708, %v646, 0.0
      %758 = vadd.xlane.f32.xlu0 %v757
      %v759 = vpop.xlane.xlu0 %758
      %v760 = vsel %vm708, %v649, 0.0
      %761 = vadd.xlane.f32.xlu0 %v760
      %v762 = vpop.xlane.xlu0 %761
      %v763 = vsel %vm708, %v654, 0.0
      %764 = vadd.xlane.f32.xlu0 %v763
      %v765 = vpop.xlane.xlu0 %764
      %v766 = vsel %vm708, %v657, 0.0
      %767 = vadd.xlane.f32.xlu0 %v766
      %v768 = vpop.xlane.xlu0 %767
      %v769 = vsel %vm708, %v662, 0.0
      %770 = vadd.xlane.f32.xlu0 %v769
      %v771 = vpop.xlane.xlu0 %770
      %v772 = vsel %vm708, %v665, 0.0
      %773 = vadd.xlane.f32.xlu0 %v772
      %v774 = vpop.xlane.xlu0 %773
      %v775 = vsel %vm708, %v670, 0.0
      %776 = vadd.xlane.f32.xlu0 %v775
      %v777 = vpop.xlane.xlu0 %776
      %v778 = vsel %vm708, %v673, 0.0
      %779 = vadd.xlane.f32.xlu0 %v778
      %v780 = vpop.xlane.xlu0 %779
      %v781 = vsel %vm708, %v678, 0.0
      %782 = vadd.xlane.f32.xlu0 %v781
      %v783 = vpop.xlane.xlu0 %782
      %v784 = vsel %vm708, %v681, 0.0
      %785 = vadd.xlane.f32.xlu0 %v784
      %v786 = vpop.xlane.xlu0 %785
      %v787 = vsel %vm708, %v686, 0.0
      %788 = vadd.xlane.f32.xlu0 %v787
      %v789 = vpop.xlane.xlu0 %788
      %v790 = vsel %vm708, %v689, 0.0
      %791 = vadd.xlane.f32.xlu0 %v790
      %v792 = vpop.xlane.xlu0 %791
      %v793 = vsel %vm708, %v694, 0.0
      %794 = vadd.xlane.f32.xlu0 %v793
      %v795 = vpop.xlane.xlu0 %794
      %v796 = vsel %vm708, %v697, 0.0
      %797 = vadd.xlane.f32.xlu0 %v796
      %v798 = vpop.xlane.xlu0 %797
      %v799 = vsel %vm708, %v702, 0.0
      %800 = vadd.xlane.f32.xlu0 %v799
      %v801 = vpop.xlane.xlu0 %800
      %v802 = vsel %vm708, %v705, 0.0
      %803 = vadd.xlane.f32.xlu0 %v802
      %v804 = vpop.xlane.xlu0 %803
      %v805 = vrcp.pop 64.0
      %v806 = vmul.f32 %v711, %v805
      %v807 = vmul.f32 %v714, %v805
      %v808 = vmul.f32 %v717, %v805
      %v809 = vmul.f32 %v720, %v805
      %v810 = vmul.f32 %v723, %v805
      %v811 = vmul.f32 %v726, %v805
      %v812 = vmul.f32 %v729, %v805
      %v813 = vmul.f32 %v732, %v805
      %v814 = vmul.f32 %v735, %v805
      %v815 = vmul.f32 %v738, %v805
      %v816 = vmul.f32 %v741, %v805
      %v817 = vmul.f32 %v744, %v805
      %v818 = vmul.f32 %v747, %v805
      %v819 = vmul.f32 %v750, %v805
      %v820 = vmul.f32 %v753, %v805
      %v821 = vmul.f32 %v756, %v805
      %v822 = vmul.f32 %v759, %v805
      %v823 = vmul.f32 %v762, %v805
      %v824 = vmul.f32 %v765, %v805
      %v825 = vmul.f32 %v768, %v805
      %v826 = vmul.f32 %v771, %v805
      %v827 = vmul.f32 %v774, %v805
      %v828 = vmul.f32 %v777, %v805
      %v829 = vmul.f32 %v780, %v805
      %v830 = vmul.f32 %v783, %v805
      %v831 = vmul.f32 %v786, %v805
      %v832 = vmul.f32 %v789, %v805
      %v833 = vmul.f32 %v792, %v805
      %v834 = vmul.f32 %v795, %v805
      %v835 = vmul.f32 %v798, %v805
      %v836 = vmul.f32 %v801, %v805
      %v837 = vmul.f32 %v804, %v805
      %v838 = vsub.f32 %v582, %v806
      %v839 = vsub.f32 %v585, %v807
      %v840 = vsub.f32 %v590, %v808
      %v841 = vsub.f32 %v593, %v809
      %v842 = vsub.f32 %v598, %v810
      %v843 = vsub.f32 %v601, %v811
      %v844 = vsub.f32 %v606, %v812
      %v845 = vsub.f32 %v609, %v813
      %v846 = vsub.f32 %v614, %v814
      %v847 = vsub.f32 %v617, %v815
      %v848 = vsub.f32 %v622, %v816
      %v849 = vsub.f32 %v625, %v817
      %v850 = vsub.f32 %v630, %v818
      %v851 = vsub.f32 %v633, %v819
      %v852 = vsub.f32 %v638, %v820
      %v853 = vsub.f32 %v641, %v821
      %v854 = vsub.f32 %v646, %v822
      %v855 = vsub.f32 %v649, %v823
      %v856 = vsub.f32 %v654, %v824
      %v857 = vsub.f32 %v657, %v825
      %v858 = vsub.f32 %v662, %v826
      %v859 = vsub.f32 %v665, %v827
      %v860 = vsub.f32 %v670, %v828
      %v861 = vsub.f32 %v673, %v829
      %v862 = vsub.f32 %v678, %v830
      %v863 = vsub.f32 %v681, %v831
      %v864 = vsub.f32 %v686, %v832
      %v865 = vsub.f32 %v689, %v833
      %v866 = vsub.f32 %v694, %v834
      %v867 = vsub.f32 %v697, %v835
      %v868 = vsub.f32 %v702, %v836
      %v869 = vsub.f32 %v705, %v837
      %v870 = vmul.f32 %v838, %v838
      %v871 = vmul.f32 %v839, %v839
      %v872 = vmul.f32 %v840, %v840
      %v873 = vmul.f32 %v841, %v841
      %v874 = vmul.f32 %v842, %v842
      %v875 = vmul.f32 %v843, %v843
      %v876 = vmul.f32 %v844, %v844
      %v877 = vmul.f32 %v845, %v845
      %v878 = vmul.f32 %v846, %v846
      %v879 = vmul.f32 %v847, %v847
      %v880 = vmul.f32 %v848, %v848
      %v881 = vmul.f32 %v849, %v849
      %v882 = vmul.f32 %v850, %v850
      %v883 = vmul.f32 %v851, %v851
      %v884 = vmul.f32 %v852, %v852
      %v885 = vmul.f32 %v853, %v853
      %v886 = vmul.f32 %v854, %v854
      %v887 = vmul.f32 %v855, %v855
      %v888 = vmul.f32 %v856, %v856
      %v889 = vmul.f32 %v857, %v857
      %v890 = vmul.f32 %v858, %v858
      %v891 = vmul.f32 %v859, %v859
      %v892 = vmul.f32 %v860, %v860
      %v893 = vmul.f32 %v861, %v861
      %v894 = vmul.f32 %v862, %v862
      %v895 = vmul.f32 %v863, %v863
      %v896 = vmul.f32 %v864, %v864
      %v897 = vmul.f32 %v865, %v865
      %v898 = vmul.f32 %v866, %v866
      %v899 = vmul.f32 %v867, %v867
      %v900 = vmul.f32 %v868, %v868
      %v901 = vmul.f32 %v869, %v869
      %v902 = vsel %vm708, %v870, 0.0
      %903 = vadd.xlane.f32.xlu0 %v902
      %v904 = vpop.xlane.xlu0 %903
      %v905 = vsel %vm708, %v871, 0.0
      %906 = vadd.xlane.f32.xlu0 %v905
      %v907 = vpop.xlane.xlu0 %906
      %v908 = vsel %vm708, %v872, 0.0
      %909 = vadd.xlane.f32.xlu0 %v908
      %v910 = vpop.xlane.xlu0 %909
      %v911 = vsel %vm708, %v873, 0.0
      %912 = vadd.xlane.f32.xlu0 %v911
      %v913 = vpop.xlane.xlu0 %912
      %v914 = vsel %vm708, %v874, 0.0
      %915 = vadd.xlane.f32.xlu0 %v914
      %v916 = vpop.xlane.xlu0 %915
      %v917 = vsel %vm708, %v875, 0.0
      %918 = vadd.xlane.f32.xlu0 %v917
      %v919 = vpop.xlane.xlu0 %918
      %v920 = vsel %vm708, %v876, 0.0
      %921 = vadd.xlane.f32.xlu0 %v920
      %v922 = vpop.xlane.xlu0 %921
      %v923 = vsel %vm708, %v877, 0.0
      %924 = vadd.xlane.f32.xlu0 %v923
      %v925 = vpop.xlane.xlu0 %924
      %v926 = vsel %vm708, %v878, 0.0
      %927 = vadd.xlane.f32.xlu0 %v926
      %v928 = vpop.xlane.xlu0 %927
      %v929 = vsel %vm708, %v879, 0.0
      %930 = vadd.xlane.f32.xlu0 %v929
      %v931 = vpop.xlane.xlu0 %930
      %v932 = vsel %vm708, %v880, 0.0
      %933 = vadd.xlane.f32.xlu0 %v932
      %v934 = vpop.xlane.xlu0 %933
      %v935 = vsel %vm708, %v881, 0.0
      %936 = vadd.xlane.f32.xlu0 %v935
      %v937 = vpop.xlane.xlu0 %936
      %v938 = vsel %vm708, %v882, 0.0
      %939 = vadd.xlane.f32.xlu0 %v938
      %v940 = vpop.xlane.xlu0 %939
      %v941 = vsel %vm708, %v883, 0.0
      %942 = vadd.xlane.f32.xlu0 %v941
      %v943 = vpop.xlane.xlu0 %942
      %v944 = vsel %vm708, %v884, 0.0
      %945 = vadd.xlane.f32.xlu0 %v944
      %v946 = vpop.xlane.xlu0 %945
      %v947 = vsel %vm708, %v885, 0.0
      %948 = vadd.xlane.f32.xlu0 %v947
      %v949 = vpop.xlane.xlu0 %948
      %v950 = vsel %vm708, %v886, 0.0
      %951 = vadd.xlane.f32.xlu0 %v950
      %v952 = vpop.xlane.xlu0 %951
      %v953 = vsel %vm708, %v887, 0.0
      %954 = vadd.xlane.f32.xlu0 %v953
      %v955 = vpop.xlane.xlu0 %954
      %v956 = vsel %vm708, %v888, 0.0
      %957 = vadd.xlane.f32.xlu0 %v956
      %v958 = vpop.xlane.xlu0 %957
      %v959 = vsel %vm708, %v889, 0.0
      %960 = vadd.xlane.f32.xlu0 %v959
      %v961 = vpop.xlane.xlu0 %960
      %v962 = vsel %vm708, %v890, 0.0
      %963 = vadd.xlane.f32.xlu0 %v962
      %v964 = vpop.xlane.xlu0 %963
      %v965 = vsel %vm708, %v891, 0.0
      %966 = vadd.xlane.f32.xlu0 %v965
      %v967 = vpop.xlane.xlu0 %966
      %v968 = vsel %vm708, %v892, 0.0
      %969 = vadd.xlane.f32.xlu0 %v968
      %v970 = vpop.xlane.xlu0 %969
      %v971 = vsel %vm708, %v893, 0.0
      %972 = vadd.xlane.f32.xlu0 %v971
      %v973 = vpop.xlane.xlu0 %972
      %v974 = vsel %vm708, %v894, 0.0
      %975 = vadd.xlane.f32.xlu0 %v974
      %v976 = vpop.xlane.xlu0 %975
      %v977 = vsel %vm708, %v895, 0.0
      %978 = vadd.xlane.f32.xlu0 %v977
      %v979 = vpop.xlane.xlu0 %978
      %v980 = vsel %vm708, %v896, 0.0
      %981 = vadd.xlane.f32.xlu0 %v980
      %v982 = vpop.xlane.xlu0 %981
      %v983 = vsel %vm708, %v897, 0.0
      %984 = vadd.xlane.f32.xlu0 %v983
      %v985 = vpop.xlane.xlu0 %984
      %v986 = vsel %vm708, %v898, 0.0
      %987 = vadd.xlane.f32.xlu0 %v986
      %v988 = vpop.xlane.xlu0 %987
      %v989 = vsel %vm708, %v899, 0.0
      %990 = vadd.xlane.f32.xlu0 %v989
      %v991 = vpop.xlane.xlu0 %990
      %v992 = vsel %vm708, %v900, 0.0
      %993 = vadd.xlane.f32.xlu0 %v992
      %v994 = vpop.xlane.xlu0 %993
      %v995 = vsel %vm708, %v901, 0.0
      %996 = vadd.xlane.f32.xlu0 %v995
      %v997 = vpop.xlane.xlu0 %996
      %v998 = vmul.f32 %v904, %v805
      %v999 = vmul.f32 %v907, %v805
      %v1000 = vmul.f32 %v910, %v805
      %v1001 = vmul.f32 %v913, %v805
      %v1002 = vmul.f32 %v916, %v805
      %v1003 = vmul.f32 %v919, %v805
      %v1004 = vmul.f32 %v922, %v805
      %v1005 = vmul.f32 %v925, %v805
      %v1006 = vmul.f32 %v928, %v805
      %v1007 = vmul.f32 %v931, %v805
      %v1008 = vmul.f32 %v934, %v805
      %v1009 = vmul.f32 %v937, %v805
      %v1010 = vmul.f32 %v940, %v805
      %v1011 = vmul.f32 %v943, %v805
      %v1012 = vmul.f32 %v946, %v805
      %v1013 = vmul.f32 %v949, %v805
      %v1014 = vmul.f32 %v952, %v805
      %v1015 = vmul.f32 %v955, %v805
      %v1016 = vmul.f32 %v958, %v805
      %v1017 = vmul.f32 %v961, %v805
      %v1018 = vmul.f32 %v964, %v805
      %v1019 = vmul.f32 %v967, %v805
      %v1020 = vmul.f32 %v970, %v805
      %v1021 = vmul.f32 %v973, %v805
      %v1022 = vmul.f32 %v976, %v805
      %v1023 = vmul.f32 %v979, %v805
      %v1024 = vmul.f32 %v982, %v805
      %v1025 = vmul.f32 %v985, %v805
      %v1026 = vmul.f32 %v988, %v805
      %v1027 = vmul.f32 %v991, %v805
      %v1028 = vmul.f32 %v994, %v805
      %v1029 = vmul.f32 %v997, %v805
      %v1030 = vadd.f32 %v998, 1e-05
      %v1031 = vadd.f32 %v999, 1e-05
      %v1032 = vadd.f32 %v1000, 1e-05
      %v1033 = vadd.f32 %v1001, 1e-05
      %v1034 = vadd.f32 %v1002, 1e-05
      %v1035 = vadd.f32 %v1003, 1e-05
      %v1036 = vadd.f32 %v1004, 1e-05
      %v1037 = vadd.f32 %v1005, 1e-05
      %v1038 = vadd.f32 %v1006, 1e-05
      %v1039 = vadd.f32 %v1007, 1e-05
      %v1040 = vadd.f32 %v1008, 1e-05
      %v1041 = vadd.f32 %v1009, 1e-05
      %v1042 = vadd.f32 %v1010, 1e-05
      %v1043 = vadd.f32 %v1011, 1e-05
      %v1044 = vadd.f32 %v1012, 1e-05
      %v1045 = vadd.f32 %v1013, 1e-05
      %v1046 = vadd.f32 %v1014, 1e-05
      %v1047 = vadd.f32 %v1015, 1e-05
      %v1048 = vadd.f32 %v1016, 1e-05
      %v1049 = vadd.f32 %v1017, 1e-05
      %v1050 = vadd.f32 %v1018, 1e-05
      %v1051 = vadd.f32 %v1019, 1e-05
      %v1052 = vadd.f32 %v1020, 1e-05
      %v1053 = vadd.f32 %v1021, 1e-05
      %v1054 = vadd.f32 %v1022, 1e-05
      %v1055 = vadd.f32 %v1023, 1e-05
      %v1056 = vadd.f32 %v1024, 1e-05
      %v1057 = vadd.f32 %v1025, 1e-05
      %v1058 = vadd.f32 %v1026, 1e-05
      %v1059 = vadd.f32 %v1027, 1e-05
      %v1060 = vadd.f32 %v1028, 1e-05
      %v1061 = vadd.f32 %v1029, 1e-05
      %v1062 = vrsqrt.pop %v1030
      %v1063 = vrsqrt.pop %v1031
      %v1064 = vrsqrt.pop %v1032
      %v1065 = vrsqrt.pop %v1033
      %v1066 = vrsqrt.pop %v1034
      %v1067 = vrsqrt.pop %v1035
      %v1068 = vrsqrt.pop %v1036
      %v1069 = vrsqrt.pop %v1037
      %v1070 = vrsqrt.pop %v1038
      %v1071 = vrsqrt.pop %v1039
      %v1072 = vrsqrt.pop %v1040
      %v1073 = vrsqrt.pop %v1041
      %v1074 = vrsqrt.pop %v1042
      %v1075 = vrsqrt.pop %v1043
      %v1076 = vrsqrt.pop %v1044
      %v1077 = vrsqrt.pop %v1045
      %v1078 = vrsqrt.pop %v1046
      %v1079 = vrsqrt.pop %v1047
      %v1080 = vrsqrt.pop %v1048
      %v1081 = vrsqrt.pop %v1049
      %v1082 = vrsqrt.pop %v1050
      %v1083 = vrsqrt.pop %v1051
      %v1084 = vrsqrt.pop %v1052
      %v1085 = vrsqrt.pop %v1053
      %v1086 = vrsqrt.pop %v1054
      %v1087 = vrsqrt.pop %v1055
      %v1088 = vrsqrt.pop %v1056
      %v1089 = vrsqrt.pop %v1057
      %v1090 = vrsqrt.pop %v1058
      %v1091 = vrsqrt.pop %v1059
      %v1092 = vrsqrt.pop %v1060
      %v1093 = vrsqrt.pop %v1061
      %v1094 = vmul.f32 %v838, %v1062
      %v1095 = vmul.f32 %v839, %v1063
      %v1096 = vmul.f32 %v840, %v1064
      %v1097 = vmul.f32 %v841, %v1065
      %v1098 = vmul.f32 %v842, %v1066
      %v1099 = vmul.f32 %v843, %v1067
      %v1100 = vmul.f32 %v844, %v1068
      %v1101 = vmul.f32 %v845, %v1069
      %v1102 = vmul.f32 %v846, %v1070
      %v1103 = vmul.f32 %v847, %v1071
      %v1104 = vmul.f32 %v848, %v1072
      %v1105 = vmul.f32 %v849, %v1073
      %v1106 = vmul.f32 %v850, %v1074
      %v1107 = vmul.f32 %v851, %v1075
      %v1108 = vmul.f32 %v852, %v1076
      %v1109 = vmul.f32 %v853, %v1077
      %v1110 = vmul.f32 %v854, %v1078
      %v1111 = vmul.f32 %v855, %v1079
      %v1112 = vmul.f32 %v856, %v1080
      %v1113 = vmul.f32 %v857, %v1081
      %v1114 = vmul.f32 %v858, %v1082
      %v1115 = vmul.f32 %v859, %v1083
      %v1116 = vmul.f32 %v860, %v1084
      %v1117 = vmul.f32 %v861, %v1085
      %v1118 = vmul.f32 %v862, %v1086
      %v1119 = vmul.f32 %v863, %v1087
      %v1120 = vmul.f32 %v864, %v1088
      %v1121 = vmul.f32 %v865, %v1089
      %v1122 = vmul.f32 %v866, %v1090
      %v1123 = vmul.f32 %v867, %v1091
      %v1124 = vmul.f32 %v868, %v1092
      %v1125 = vmul.f32 %v869, %v1093
      %v1126 = vld [vmem:[%s3] sm:$0x1]
      %v1128 = vlaneseq
      %v1129 = vshrl.u32 %v1128, 7
      %v1130 = vsub.s32 0, %v1129
      %v1131 = vrot.slane %v1126, %v1130
      %v1133 = vmul.f32 %v1094, %v1131
      %v1134 = vmul.f32 %v1095, %v1131
      %v1135 = vmul.f32 %v1096, %v1131
      %v1136 = vmul.f32 %v1097, %v1131
      %v1137 = vmul.f32 %v1098, %v1131
      %v1138 = vmul.f32 %v1099, %v1131
      %v1139 = vmul.f32 %v1100, %v1131
      %v1140 = vmul.f32 %v1101, %v1131
      %v1141 = vmul.f32 %v1102, %v1131
      %v1142 = vmul.f32 %v1103, %v1131
      %v1143 = vmul.f32 %v1104, %v1131
      %v1144 = vmul.f32 %v1105, %v1131
      %v1145 = vmul.f32 %v1106, %v1131
      %v1146 = vmul.f32 %v1107, %v1131
      %v1147 = vmul.f32 %v1108, %v1131
      %v1148 = vmul.f32 %v1109, %v1131
      %v1149 = vmul.f32 %v1110, %v1131
      %v1150 = vmul.f32 %v1111, %v1131
      %v1151 = vmul.f32 %v1112, %v1131
      %v1152 = vmul.f32 %v1113, %v1131
      %v1153 = vmul.f32 %v1114, %v1131
      %v1154 = vmul.f32 %v1115, %v1131
      %v1155 = vmul.f32 %v1116, %v1131
      %v1156 = vmul.f32 %v1117, %v1131
      %v1157 = vmul.f32 %v1118, %v1131
      %v1158 = vmul.f32 %v1119, %v1131
      %v1159 = vmul.f32 %v1120, %v1131
      %v1160 = vmul.f32 %v1121, %v1131
      %v1161 = vmul.f32 %v1122, %v1131
      %v1162 = vmul.f32 %v1123, %v1131
      %v1163 = vmul.f32 %v1124, %v1131
      %v1164 = vmul.f32 %v1125, %v1131
      %v1165 = vld [vmem:[%s4] sm:$0x1]
      %v1167 = vlaneseq
      %v1168 = vshrl.u32 %v1167, 7
      %v1169 = vsub.s32 0, %v1168
      %v1170 = vrot.slane %v1165, %v1169
      %v1172 = vadd.f32 %v1133, %v1170
      %v1173 = vadd.f32 %v1134, %v1170
      %v1174 = vadd.f32 %v1135, %v1170
      %v1175 = vadd.f32 %v1136, %v1170
      %v1176 = vadd.f32 %v1137, %v1170
      %v1177 = vadd.f32 %v1138, %v1170
      %v1178 = vadd.f32 %v1139, %v1170
      %v1179 = vadd.f32 %v1140, %v1170
      %v1180 = vadd.f32 %v1141, %v1170
      %v1181 = vadd.f32 %v1142, %v1170
      %v1182 = vadd.f32 %v1143, %v1170
      %v1183 = vadd.f32 %v1144, %v1170
      %v1184 = vadd.f32 %v1145, %v1170
      %v1185 = vadd.f32 %v1146, %v1170
      %v1186 = vadd.f32 %v1147, %v1170
      %v1187 = vadd.f32 %v1148, %v1170
      %v1188 = vadd.f32 %v1149, %v1170
      %v1189 = vadd.f32 %v1150, %v1170
      %v1190 = vadd.f32 %v1151, %v1170
      %v1191 = vadd.f32 %v1152, %v1170
      %v1192 = vadd.f32 %v1153, %v1170
      %v1193 = vadd.f32 %v1154, %v1170
      %v1194 = vadd.f32 %v1155, %v1170
      %v1195 = vadd.f32 %v1156, %v1170
      %v1196 = vadd.f32 %v1157, %v1170
      %v1197 = vadd.f32 %v1158, %v1170
      %v1198 = vadd.f32 %v1159, %v1170
      %v1199 = vadd.f32 %v1160, %v1170
      %v1200 = vadd.f32 %v1161, %v1170
      %v1201 = vadd.f32 %v1162, %v1170
      %v1202 = vadd.f32 %v1163, %v1170
      %v1203 = vadd.f32 %v1164, %v1170
      %v1204 = vpack.c.bf16 %v1173, %v1172
      %v1205 = vpack.c.bf16 %v1175, %v1174
      %v1206 = vpack.c.bf16 %v1177, %v1176
      %v1207 = vpack.c.bf16 %v1179, %v1178
      %v1208 = vpack.c.bf16 %v1181, %v1180
      %v1209 = vpack.c.bf16 %v1183, %v1182
      %v1210 = vpack.c.bf16 %v1185, %v1184
      %v1211 = vpack.c.bf16 %v1187, %v1186
      %v1212 = vpack.c.bf16 %v1189, %v1188
      %v1213 = vpack.c.bf16 %v1191, %v1190
      %v1214 = vpack.c.bf16 %v1193, %v1192
      %v1215 = vpack.c.bf16 %v1195, %v1194
      %v1216 = vpack.c.bf16 %v1197, %v1196
      %v1217 = vpack.c.bf16 %v1199, %v1198
      %v1218 = vpack.c.bf16 %v1201, %v1200
      %v1219 = vpack.c.bf16 %v1203, %v1202
      %v1236 = vunpack.c.l.b16 %v1204
      %v1237 = vunpack.c.h.b16 %v1204
      %v1238 = vunpack.c.l.b16 %v1205
      %v1239 = vunpack.c.h.b16 %v1205
      %v1240 = vunpack.c.l.b16 %v1206
      %v1241 = vunpack.c.h.b16 %v1206
      %v1242 = vunpack.c.l.b16 %v1207
      %v1243 = vunpack.c.h.b16 %v1207
      %v1244 = vunpack.c.l.b16 %v1208
      %v1245 = vunpack.c.h.b16 %v1208
      %v1246 = vunpack.c.l.b16 %v1209
      %v1247 = vunpack.c.h.b16 %v1209
      %v1248 = vunpack.c.l.b16 %v1210
      %v1249 = vunpack.c.h.b16 %v1210
      %v1250 = vunpack.c.l.b16 %v1211
      %v1251 = vunpack.c.h.b16 %v1211
      %v1252 = vunpack.c.l.b16 %v1212
      %v1253 = vunpack.c.h.b16 %v1212
      %v1254 = vunpack.c.l.b16 %v1213
      %v1255 = vunpack.c.h.b16 %v1213
      %v1256 = vunpack.c.l.b16 %v1214
      %v1257 = vunpack.c.h.b16 %v1214
      %v1258 = vunpack.c.l.b16 %v1215
      %v1259 = vunpack.c.h.b16 %v1215
      %v1260 = vunpack.c.l.b16 %v1216
      %v1261 = vunpack.c.h.b16 %v1216
      %v1262 = vunpack.c.l.b16 %v1217
      %v1263 = vunpack.c.h.b16 %v1217
      %v1264 = vunpack.c.l.b16 %v1218
      %v1265 = vunpack.c.h.b16 %v1218
      %v1266 = vunpack.c.l.b16 %v1219
      %v1267 = vunpack.c.h.b16 %v1219
      %v1268 = vpack.c.b16 %v1236, %v1236
      %v1269 = vpack.c.b16 %v1237, %v1237
      %v1270 = vpack.c.b16 %v1238, %v1238
      %v1271 = vpack.c.b16 %v1239, %v1239
      %v1272 = vpack.c.b16 %v1240, %v1240
      %v1273 = vpack.c.b16 %v1241, %v1241
      %v1274 = vpack.c.b16 %v1242, %v1242
      %v1275 = vpack.c.b16 %v1243, %v1243
      %v1276 = vpack.c.b16 %v1244, %v1244
      %v1277 = vpack.c.b16 %v1245, %v1245
      %v1278 = vpack.c.b16 %v1246, %v1246
      %v1279 = vpack.c.b16 %v1247, %v1247
      %v1280 = vpack.c.b16 %v1248, %v1248
      %v1281 = vpack.c.b16 %v1249, %v1249
      %v1282 = vpack.c.b16 %v1250, %v1250
      %v1283 = vpack.c.b16 %v1251, %v1251
      %v1284 = vpack.c.b16 %v1252, %v1252
      %v1285 = vpack.c.b16 %v1253, %v1253
      %v1286 = vpack.c.b16 %v1254, %v1254
      %v1287 = vpack.c.b16 %v1255, %v1255
      %v1288 = vpack.c.b16 %v1256, %v1256
      %v1289 = vpack.c.b16 %v1257, %v1257
      %v1290 = vpack.c.b16 %v1258, %v1258
      %v1291 = vpack.c.b16 %v1259, %v1259
      %v1292 = vpack.c.b16 %v1260, %v1260
      %v1293 = vpack.c.b16 %v1261, %v1261
      %v1294 = vpack.c.b16 %v1262, %v1262
      %v1295 = vpack.c.b16 %v1263, %v1263
      %v1296 = vpack.c.b16 %v1264, %v1264
      %v1297 = vpack.c.b16 %v1265, %v1265
      %v1298 = vpack.c.b16 %v1266, %v1266
      %v1299 = vpack.c.b16 %v1267, %v1267
      %vm1332 = vcmask 519168
      %1333 = vst.msk [vmem:[%s229] sm:$0xf] %vm1332, %v1268
      %1334 = vst.msk [vmem:[%s229 + $0x4] sm:$0xf] %vm1332, %v1269
      %1335 = vst.msk [vmem:[%s229 + $0x8] sm:$0xf] %vm1332, %v1270
      %1336 = vst.msk [vmem:[%s229 + $0xc] sm:$0xf] %vm1332, %v1271
      %1337 = vst.msk [vmem:[%s229 + $0x10] sm:$0xf] %vm1332, %v1272
      %1338 = vst.msk [vmem:[%s229 + $0x14] sm:$0xf] %vm1332, %v1273
      %1339 = vst.msk [vmem:[%s229 + $0x18] sm:$0xf] %vm1332, %v1274
      %1340 = vst.msk [vmem:[%s229 + $0x1c] sm:$0xf] %vm1332, %v1275
      %1341 = vst.msk [vmem:[%s229 + $0x20] sm:$0xf] %vm1332, %v1276
      %1342 = vst.msk [vmem:[%s229 + $0x24] sm:$0xf] %vm1332, %v1277
      %1343 = vst.msk [vmem:[%s229 + $0x28] sm:$0xf] %vm1332, %v1278
      %1344 = vst.msk [vmem:[%s229 + $0x2c] sm:$0xf] %vm1332, %v1279
      %1345 = vst.msk [vmem:[%s229 + $0x30] sm:$0xf] %vm1332, %v1280
      %1346 = vst.msk [vmem:[%s229 + $0x34] sm:$0xf] %vm1332, %v1281
      %1347 = vst.msk [vmem:[%s229 + $0x38] sm:$0xf] %vm1332, %v1282
      %1348 = vst.msk [vmem:[%s229 + $0x3c] sm:$0xf] %vm1332, %v1283
      %1349 = vst.msk [vmem:[%s229 + $0x40] sm:$0xf] %vm1332, %v1284
      %1350 = vst.msk [vmem:[%s229 + $0x44] sm:$0xf] %vm1332, %v1285
      %1351 = vst.msk [vmem:[%s229 + $0x48] sm:$0xf] %vm1332, %v1286
      %1352 = vst.msk [vmem:[%s229 + $0x4c] sm:$0xf] %vm1332, %v1287
      %1353 = vst.msk [vmem:[%s229 + $0x50] sm:$0xf] %vm1332, %v1288
      %1354 = vst.msk [vmem:[%s229 + $0x54] sm:$0xf] %vm1332, %v1289
      %1355 = vst.msk [vmem:[%s229 + $0x58] sm:$0xf] %vm1332, %v1290
      %1356 = vst.msk [vmem:[%s229 + $0x5c] sm:$0xf] %vm1332, %v1291
      %1357 = vst.msk [vmem:[%s229 + $0x60] sm:$0xf] %vm1332, %v1292
      %1358 = vst.msk [vmem:[%s229 + $0x64] sm:$0xf] %vm1332, %v1293
      %1359 = vst.msk [vmem:[%s229 + $0x68] sm:$0xf] %vm1332, %v1294
      %1360 = vst.msk [vmem:[%s229 + $0x6c] sm:$0xf] %vm1332, %v1295
      %1361 = vst.msk [vmem:[%s229 + $0x70] sm:$0xf] %vm1332, %v1296
      %1362 = vst.msk [vmem:[%s229 + $0x74] sm:$0xf] %vm1332, %v1297
      %1363 = vst.msk [vmem:[%s229 + $0x78] sm:$0xf] %vm1332, %v1298
      %1364 = vst.msk [vmem:[%s229 + $0x7c] sm:$0xf] %vm1332, %v1299
      %s1365 = smul.u32 32, %s16
      %p1366 = scmp.lt.s32.totalorder %s1365, 63
      %s1367 = scalar_select %p1366, %s1365, 63
      %s1368 = smul.addr %s1367, 4
      %s1369 = scalar_lea.vmem %s5, %s1368
      // Predicated region
      $region41: #{_fused_matmul_core.1} parent=39 // pred_check
        %p1370 = pneg %p144
      $region42: #{_fused_matmul_core.1} parent=39 // pred_check_branch
        %1372 = sbr.rel (%p1370) target = $region44
      $region43: #{_fused_matmul_core.1} parent=39 // pred_region
        %s1373 = smul.u32 32, %s16
      $region44: #{_fused_matmul_core.1} parent=39 // pred_fallthru
        _
    $region40: #{_fused_matmul_core.1} parent=5 // pred_fallthru
      _
    %p1374 = scmp.le.s32.totalorder 2, %s11
    // Predicated region
    $region45: #{_fused_matmul_core.1} parent=5 // pred_check
      %p1375 = pneg %p1374
    $region46: #{_fused_matmul_core.1} parent=5 // pred_check_branch
      %1377 = sbr.rel (%p1375) target = $region48
    $region47: #{_fused_matmul_core.1} parent=5 // pred_region
      %s1378 = ssub.s32 %s11, 2
      // Predicated region
      $region49: #{_fused_matmul_core.1} parent=47 // pred_check
        %p1379 = pneg %p150
      $region50: #{_fused_matmul_core.1} parent=47 // pred_check_branch
        %1381 = sbr.rel (%p1379) target = $region52
      $region51: #{_fused_matmul_core.1} parent=47 // pred_region
        %s1382 = smul.u32 32, %s17
        %p1383 = scmp.lt.s32.totalorder %s1382, 63
        %s1384 = scalar_select %p1383, %s1382, 63
        %s1385 = smul.addr %s1384, 4
        %s1386 = scalar_lea.vmem %s5, %s1385
      $region52: #{_fused_matmul_core.1} parent=47 // pred_fallthru
        _
    $region48: #{_fused_matmul_core.1} parent=5 // pred_fallthru
      _
  $region6: #{_fused_matmul_core.1} parent=0 // loop_footer
    %s15 = sadd.s32 1, %s11
  $region7: #{_fused_matmul_core.1} parent=0 // loop_footer_branch
    %10 = sbr.rel target = $region3
  $region8: #{_fused_matmul_core.1} parent=0 // loop_exit
    _

</llo_original>
